<compile_context>
chip_gen: v6e
topology: v6e:2x2x1
jax: 0.10.0
libtpu: 0.0.40
codegen_flags: <defaults>
</compile_context>

<pallas_src>
import functools

import jax
import jax.numpy as jnp
from jax.experimental import pallas as pl
from jax.experimental.pallas import tpu as pltpu

EPS = 1e-5        # PyTorch LayerNorm default eps
NEG_INF = -1e20


def _row_tile(m):
    """Largest row tile <= 512 that divides m (keeps (8,128) tiling rules)."""
    for t in (512, 256, 128, 64, 32, 16, 8):
        if t <= m and m % t == 0:
            return t
    return m


# ----------------------------------------------------------------------------
# Kernels
# ----------------------------------------------------------------------------
def _linear_kernel(x_ref, w_ref, b_ref, o_ref):
    # x: (tm, K), w: (K, N), b: (1, N) -> o: (tm, N).  bf16 operands, f32 acc.
    o_ref[...] = (
        jnp.dot(x_ref[...].astype(jnp.bfloat16),
                w_ref[...].astype(jnp.bfloat16),
                preferred_element_type=jnp.float32)
        + b_ref[...]
    )


def _attn_ln_kernel(qrkv_ref, mask_ref, wo_ref, bo_ref, res_ref, g_ref, b_ref,
                    o_ref, *, n_heads, inv_scale):
    # qrkv: (1, S, 4E) laid out as [Q | R | K | V]; mask: (S, S);
    # wo: (E, E); bo/g/b: (1, E); res: (1, S, E); o: (1, S, E).
    E = wo_ref.shape[0]
    dh = E // n_heads
    x = qrkv_ref[0]                    # (S, 4E) f32
    mask = mask_ref[...]               # (S, S)
    wo = wo_ref[...]                   # (E, E)
    res = res_ref[0]                   # (S, E)
    S = x.shape[0]

    acc = jnp.zeros((S, E), jnp.float32)
    for h in range(n_heads):           # static unrolled head loop
        q = x[:, h * dh:(h + 1) * dh] * inv_scale          # scale folded into Q
        r = x[:, E + h * dh:E + (h + 1) * dh]
        k = x[:, 2 * E + h * dh:2 * E + (h + 1) * dh]
        v = x[:, 3 * E + h * dh:3 * E + (h + 1) * dh]
        # energy[i, j] = q_i . k_j  (bf16 MXU operands, f32 accumulation)
        energy = jax.lax.dot_general(
            q.astype(jnp.bfloat16), k.astype(jnp.bfloat16),
            (((1,), (1,)), ((), ())), preferred_element_type=jnp.float32)
        energy = jnp.where(mask == 0.0, jnp.float32(NEG_INF), energy)
        m = jnp.max(energy, axis=-1, keepdims=True)
        p = jnp.exp(energy - m)
        attn = p * pl.reciprocal(jnp.sum(p, axis=-1, keepdims=True), approx=True)
        ctx = jnp.dot(attn.astype(jnp.bfloat16), v.astype(jnp.bfloat16),
                      preferred_element_type=jnp.float32)   # (S, dh)
        bound = ctx * r                                     # TP role binding
        # fc_out accumulated per head: bound_h @ wo[h*dh:(h+1)*dh, :]
        acc = acc + jnp.dot(bound.astype(jnp.bfloat16),
                            wo[h * dh:(h + 1) * dh, :].astype(jnp.bfloat16),
                            preferred_element_type=jnp.float32)

    # fc_out bias + residual + LayerNorm (all f32)
    y = acc + bo_ref[...] + res
    mu = jnp.mean(y, axis=-1, keepdims=True)
    var = jnp.mean((y - mu) ** 2, axis=-1, keepdims=True)
    o_ref[0] = (y - mu) * jax.lax.rsqrt(var + EPS) * g_ref[...] + b_ref[...]


def _ffn_ln_kernel(x_ref, w1_ref, b1_ref, w2_ref, b2_ref, g_ref, b_ref, o_ref):
    # x: (tm, E) is both FFN input and residual; fused E->4E->ReLU->4E->E + LN.
    x = x_ref[...]
    h = jnp.dot(x.astype(jnp.bfloat16), w1_ref[...].astype(jnp.bfloat16),
                preferred_element_type=jnp.float32) + b1_ref[...]
    h = jnp.maximum(h, 0.0)
    f = jnp.dot(h.astype(jnp.bfloat16), w2_ref[...].astype(jnp.bfloat16),
                preferred_element_type=jnp.float32) + b2_ref[...]
    y = f + x
    mu = jnp.mean(y, axis=-1, keepdims=True)
    var = jnp.mean((y - mu) ** 2, axis=-1, keepdims=True)
    o_ref[...] = (y - mu) * jax.lax.rsqrt(var + EPS) * g_ref[...] + b_ref[...]


# ----------------------------------------------------------------------------
# pallas_call wrappers
# ----------------------------------------------------------------------------
def linear(x2d, w, b):
    M, K = x2d.shape
    N = w.shape[1]
    tm = _row_tile(M)
    return pl.pallas_call(
        _linear_kernel,
        grid=(M // tm,),
        out_shape=jax.ShapeDtypeStruct((M, N), jnp.float32),
        in_specs=[
            pl.BlockSpec((tm, K), lambda i: (i, 0)),
            pl.BlockSpec((K, N), lambda i: (0, 0)),   # weight stays resident
            pl.BlockSpec((1, N), lambda i: (0, 0)),
        ],
        out_specs=pl.BlockSpec((tm, N), lambda i: (i, 0)),
        compiler_params=pltpu.CompilerParams(dimension_semantics=("parallel",)),
    )(x2d, w, b.reshape(1, N))


def attention_ln(qrkv, mask, wo, bo, residual, gamma, beta, n_heads, inv_scale):
    B, S, E4 = qrkv.shape
    E = E4 // 4
    assert E % n_heads == 0
    kernel = functools.partial(_attn_ln_kernel, n_heads=n_heads,
                               inv_scale=inv_scale)
    return pl.pallas_call(
        kernel,
        grid=(B,),
        out_shape=jax.ShapeDtypeStruct((B, S, E), jnp.float32),
        in_specs=[
            pl.BlockSpec((1, S, E4), lambda b: (b, 0, 0)),
            pl.BlockSpec((S, S), lambda b: (0, 0)),
            pl.BlockSpec((E, E), lambda b: (0, 0)),
            pl.BlockSpec((1, E), lambda b: (0, 0)),
            pl.BlockSpec((1, S, E), lambda b: (b, 0, 0)),
            pl.BlockSpec((1, E), lambda b: (0, 0)),
            pl.BlockSpec((1, E), lambda b: (0, 0)),
        ],
        out_specs=pl.BlockSpec((1, S, E), lambda b: (b, 0, 0)),
        compiler_params=pltpu.CompilerParams(dimension_semantics=("parallel",)),
    )(qrkv, mask, wo, bo.reshape(1, E), residual,
      gamma.reshape(1, E), beta.reshape(1, E))


def ffn_ln(x2d, w1, b1, w2, b2, gamma, beta):
    M, E = x2d.shape
    H = w1.shape[1]
    tm = _row_tile(M)
    return pl.pallas_call(
        _ffn_ln_kernel,
        grid=(M // tm,),
        out_shape=jax.ShapeDtypeStruct((M, E), jnp.float32),
        in_specs=[
            pl.BlockSpec((tm, E), lambda i: (i, 0)),
            pl.BlockSpec((E, H), lambda i: (0, 0)),
            pl.BlockSpec((1, H), lambda i: (0, 0)),
            pl.BlockSpec((H, E), lambda i: (0, 0)),
            pl.BlockSpec((1, E), lambda i: (0, 0)),
            pl.BlockSpec((1, E), lambda i: (0, 0)),
            pl.BlockSpec((1, E), lambda i: (0, 0)),
        ],
        out_specs=pl.BlockSpec((tm, E), lambda i: (i, 0)),
        compiler_params=pltpu.CompilerParams(dimension_semantics=("parallel",)),
    )(x2d, w1, b1.reshape(1, H), w2, b2.reshape(1, E),
      gamma.reshape(1, E), beta.reshape(1, E))


# ----------------------------------------------------------------------------
# Module-level forward (glue in plain JAX, compute in Pallas)
# ----------------------------------------------------------------------------
def _inv_scale(E):
    scale = E ** 1 / 2        # replicates torch precedence bug: == E / 2
    return 1.0 / scale


def self_attention_ln(p_attn, gamma, beta, x, mask, n_heads):
    # value = key = query = x  ->  single fused [Q|R|K|V] projection.
    B, S, E = x.shape
    qrkv = linear(x.reshape(B * S, E), p_attn["w_qrkv"], p_attn["b_qrkv"])
    qrkv = qrkv.reshape(B, S, 4 * E)
    return attention_ln(qrkv, mask, p_attn["wo"], p_attn["bo"], x,
                        gamma, beta, n_heads, _inv_scale(E))


def cross_attention_ln(p_attn, gamma, beta, value, key, query, mask, n_heads):
    # Q and R both project `query` -> fused [Q|R]; K projects key, V projects value.
    B, S, E = query.shape
    qr = linear(query.reshape(B * S, E), p_attn["w_qr"], p_attn["b_qr"])
    k = linear(key.reshape(B * S, E), p_attn["wk"], p_attn["bk"])
    v = linear(value.reshape(B * S, E), p_attn["wv"], p_attn["bv"])
    qrkv = jnp.concatenate([qr, k, v], axis=-1).reshape(B, S, 4 * E)
    return attention_ln(qrkv, mask, p_attn["wo"], p_attn["bo"], query,
                        gamma, beta, n_heads, _inv_scale(E))


def transformer_block(p, value, key, query, mask, n_heads):
    B, S, E = query.shape
    out = cross_attention_ln(p["attn"], p["n1_g"], p["n1_b"],
                             value, key, query, mask, n_heads)
    # dropout -> identity (eval mode)
    out2 = ffn_ln(out.reshape(B * S, E), p["w1"], p["b1"], p["w2"], p["b2"],
                  p["n2_g"], p["n2_b"])
    return out2.reshape(B, S, E)


def decoder_block(p, inp, value, key, src_mask, trg_mask, n_heads):
    out = self_attention_ln(p["attn"], p["n1_g"], p["n1_b"], inp, trg_mask,
                            n_heads)
    # dropout -> identity (eval mode)
    return transformer_block(p["tb"], value, key, out, src_mask, n_heads)


# ----------------------------------------------------------------------------
# Deterministic parameter construction
# ----------------------------------------------------------------------------
def _init_linear(key, fan_in, fan_out):
    kw, kb = jax.random.split(key)
    bound = 1.0 / (fan_in ** 0.5)
    w = jax.random.uniform(kw, (fan_in, fan_out), jnp.float32, -bound, bound)
    b = jax.random.uniform(kb, (fan_out,), jnp.float32, -bound, bound)
    return w, b


def _init_attention(key, E, fused_all):
    ks = jax.random.split(key, 5)
    wq, bq = _init_linear(ks[0], E, E)
    wk, bk = _init_linear(ks[1], E, E)
    wv, bv = _init_linear(ks[2], E, E)
    wr, br = _init_linear(ks[3], E, E)
    wo, bo = _init_linear(ks[4], E, E)
    if fused_all:       # self-attention: one fused [Q|R|K|V] weight
        return dict(w_qrkv=jnp.concatenate([wq, wr, wk, wv], axis=1),
                    b_qrkv=jnp.concatenate([bq, br, bk, bv], axis=0),
                    wo=wo, bo=bo)
    # cross-attention: Q,R share the query input -> fuse only [Q|R]
    return dict(w_qr=jnp.concatenate([wq, wr], axis=1),
                b_qr=jnp.concatenate([bq, br], axis=0),
                wk=wk, bk=bk, wv=wv, bv=bv, wo=wo, bo=bo)


def init_decoder_block(key, E):
    ks = jax.random.split(key, 4)
    attn = _init_attention(ks[0], E, fused_all=True)
    tb_attn = _init_attention(ks[1], E, fused_all=False)
    w1, b1 = _init_linear(ks[2], E, 4 * E)
    w2, b2 = _init_linear(ks[3], 4 * E, E)
    tb = dict(
        attn=tb_attn,
        n1_g=jnp.ones((E,), jnp.float32), n1_b=jnp.zeros((E,), jnp.float32),
        n2_g=jnp.ones((E,), jnp.float32), n2_b=jnp.zeros((E,), jnp.float32),
        w1=w1, b1=b1, w2=w2, b2=b2,
    )
    return dict(
        attn=attn,
        n1_g=jnp.ones((E,), jnp.float32), n1_b=jnp.zeros((E,), jnp.float32),
        tb=tb,
    )


# ----------------------------------------------------------------------------
if __name__ == "__main__":
    B, S, E, H = 2, 8, 32, 4

    root = jax.random.PRNGKey(0)
    kp, kx, kv, kk = jax.random.split(root, 4)
    params = init_decoder_block(kp, E)

    x = jax.random.normal(kx, (B, S, E), jnp.float32)       # decoder input
    enc_v = jax.random.normal(kv, (B, S, E), jnp.float32)   # encoder value
    enc_k = jax.random.normal(kk, (B, S, E), jnp.float32)   # encoder key

    # trg_mask: causal; src_mask: all-visible (float 0/1, shared across B, H)
    trg_mask = jnp.tril(jnp.ones((S, S), jnp.float32))
    src_mask = jnp.ones((S, S), jnp.float32)

    fwd = jax.jit(functools.partial(decoder_block, n_heads=H))
    out = fwd(params, x, enc_v, enc_k, src_mask, trg_mask)
    jax.block_until_ready(out)

    assert out.shape == (B, S, E) and out.dtype == jnp.float32
    assert bool(jnp.all(jnp.isfinite(out)))
    print("KERNEL_OK")
</pallas_src>

<mosaic_0001>
module attributes {stable_mosaic.version = 11 : i64} {
  func.func @_linear_kernel(%arg0: i32, %arg1: memref<16x32xf32, #tpu.memory_space<vmem>>, %arg2: memref<32x32xf32, #tpu.memory_space<vmem>>, %arg3: memref<1x32xf32, #tpu.memory_space<vmem>>, %arg4: memref<16x32xf32, #tpu.memory_space<vmem>>) attributes {dimension_semantics = [#tpu.dimension_semantics<parallel>], iteration_bounds = array<i64: 1>, scalar_prefetch = 0 : i64, scratch_operands = 0 : i64, tpu.core_type = #tpu.core_type<tc>, window_params = [{transform_indices = @transform_0, window_bounds = array<i64: 16, 32>}, {pipeline_mode = #tpu.pipeline_mode<synchronous>, transform_indices = @transform_1, window_bounds = array<i64: 32, 32>}, {pipeline_mode = #tpu.pipeline_mode<synchronous>, transform_indices = @transform_2, window_bounds = array<i64: 1, 32>}, {transform_indices = @transform_3, window_bounds = array<i64: 16, 32>}]} {
    %c0 = arith.constant 0 : index
    %c0_0 = arith.constant 0 : index
    %0 = vector.load %arg1[%c0, %c0_0] : memref<16x32xf32, #tpu.memory_space<vmem>>, vector<16x32xf32>
    %1 = arith.truncf %0 : vector<16x32xf32> to vector<16x32xbf16>
    %c0_1 = arith.constant 0 : index
    %c0_2 = arith.constant 0 : index
    %2 = vector.load %arg2[%c0_1, %c0_2] : memref<32x32xf32, #tpu.memory_space<vmem>>, vector<32x32xf32>
    %3 = arith.truncf %2 : vector<32x32xf32> to vector<32x32xbf16>
    %cst = arith.constant dense<0.000000e+00> : vector<16x32xf32>
    %4 = tpu.matmul %1, %3, %cst {dimension_numbers = #tpu.dot_dimension_numbers<[1], [0], [0], [1], [0, 0, 1, 1], [], []>} : vector<16x32xbf16>, vector<32x32xbf16>, vector<16x32xf32> -> vector<16x32xf32>
    %c0_3 = arith.constant 0 : index
    %c0_4 = arith.constant 0 : index
    %5 = vector.load %arg3[%c0_3, %c0_4] : memref<1x32xf32, #tpu.memory_space<vmem>>, vector<1x32xf32>
    %6 = vector.broadcast %5 : vector<1x32xf32> to vector<16x32xf32>
    %7 = arith.addf %4, %6 : vector<16x32xf32>
    %c0_5 = arith.constant 0 : index
    %c0_6 = arith.constant 0 : index
    %8 = vector.load %arg4[%c0_5, %c0_6] : memref<16x32xf32, #tpu.memory_space<vmem>>, vector<16x32xf32>
    tpu.vector_store %arg4[%c0_5, %c0_6], %7 {strides = array<i32>} : memref<16x32xf32, #tpu.memory_space<vmem>>, vector<16x32xf32>,
    return
  }
  func.func @transform_0(%arg0: i32) -> (i32, i32) {
    %c0_i32 = arith.constant 0 : i32
    %c0_i32_0 = arith.constant 0 : i32
    return %arg0, %c0_i32 : i32, i32
  }
  func.func @transform_1(%arg0: i32) -> (i32, i32) {
    %c0_i32 = arith.constant 0 : i32
    %c0_i32_0 = arith.constant 0 : i32
    %c0_i32_1 = arith.constant 0 : i32
    return %c0_i32, %c0_i32_0 : i32, i32
  }
  func.func @transform_2(%arg0: i32) -> (i32, i32) {
    %c0_i32 = arith.constant 0 : i32
    %c0_i32_0 = arith.constant 0 : i32
    %c0_i32_1 = arith.constant 0 : i32
    return %c0_i32, %c0_i32_0 : i32, i32
  }
  func.func @transform_3(%arg0: i32) -> (i32, i32) {
    %c0_i32 = arith.constant 0 : i32
    %c0_i32_0 = arith.constant 0 : i32
    return %arg0, %c0_i32 : i32, i32
  }
}

module attributes {stable_mosaic.version = 11 : i64} {
  func.func @_linear_kernel(%arg0: i32, %arg1: memref<16x32xf32, #tpu.memory_space<vmem>>, %arg2: memref<32x64xf32, #tpu.memory_space<vmem>>, %arg3: memref<1x64xf32, #tpu.memory_space<vmem>>, %arg4: memref<16x64xf32, #tpu.memory_space<vmem>>) attributes {dimension_semantics = [#tpu.dimension_semantics<parallel>], iteration_bounds = array<i64: 1>, scalar_prefetch = 0 : i64, scratch_operands = 0 : i64, tpu.core_type = #tpu.core_type<tc>, window_params = [{transform_indices = @transform_0, window_bounds = array<i64: 16, 32>}, {pipeline_mode = #tpu.pipeline_mode<synchronous>, transform_indices = @transform_1, window_bounds = array<i64: 32, 64>}, {pipeline_mode = #tpu.pipeline_mode<synchronous>, transform_indices = @transform_2, window_bounds = array<i64: 1, 64>}, {transform_indices = @transform_3, window_bounds = array<i64: 16, 64>}]} {
    %c0 = arith.constant 0 : index
    %c0_0 = arith.constant 0 : index
    %0 = vector.load %arg1[%c0, %c0_0] : memref<16x32xf32, #tpu.memory_space<vmem>>, vector<16x32xf32>
    %1 = arith.truncf %0 : vector<16x32xf32> to vector<16x32xbf16>
    %c0_1 = arith.constant 0 : index
    %c0_2 = arith.constant 0 : index
    %2 = vector.load %arg2[%c0_1, %c0_2] : memref<32x64xf32, #tpu.memory_space<vmem>>, vector<32x64xf32>
    %3 = arith.truncf %2 : vector<32x64xf32> to vector<32x64xbf16>
    %cst = arith.constant dense<0.000000e+00> : vector<16x64xf32>
    %4 = tpu.matmul %1, %3, %cst {dimension_numbers = #tpu.dot_dimension_numbers<[1], [0], [0], [1], [0, 0, 1, 1], [], []>} : vector<16x32xbf16>, vector<32x64xbf16>, vector<16x64xf32> -> vector<16x64xf32>
    %c0_3 = arith.constant 0 : index
    %c0_4 = arith.constant 0 : index
    %5 = vector.load %arg3[%c0_3, %c0_4] : memref<1x64xf32, #tpu.memory_space<vmem>>, vector<1x64xf32>
    %6 = vector.broadcast %5 : vector<1x64xf32> to vector<16x64xf32>
    %7 = arith.addf %4, %6 : vector<16x64xf32>
    %c0_5 = arith.constant 0 : index
    %c0_6 = arith.constant 0 : index
    %8 = vector.load %arg4[%c0_5, %c0_6] : memref<16x64xf32, #tpu.memory_space<vmem>>, vector<16x64xf32>
    tpu.vector_store %arg4[%c0_5, %c0_6], %7 {strides = array<i32>} : memref<16x64xf32, #tpu.memory_space<vmem>>, vector<16x64xf32>,
    return
  }
  func.func @transform_0(%arg0: i32) -> (i32, i32) {
    %c0_i32 = arith.constant 0 : i32
    %c0_i32_0 = arith.constant 0 : i32
    return %arg0, %c0_i32 : i32, i32
  }
  func.func @transform_1(%arg0: i32) -> (i32, i32) {
    %c0_i32 = arith.constant 0 : i32
    %c0_i32_0 = arith.constant 0 : i32
    %c0_i32_1 = arith.constant 0 : i32
    return %c0_i32, %c0_i32_0 : i32, i32
  }
  func.func @transform_2(%arg0: i32) -> (i32, i32) {
    %c0_i32 = arith.constant 0 : i32
    %c0_i32_0 = arith.constant 0 : i32
    %c0_i32_1 = arith.constant 0 : i32
    return %c0_i32, %c0_i32_0 : i32, i32
  }
  func.func @transform_3(%arg0: i32) -> (i32, i32) {
    %c0_i32 = arith.constant 0 : i32
    %c0_i32_0 = arith.constant 0 : i32
    return %arg0, %c0_i32 : i32, i32
  }
}

module attributes {stable_mosaic.version = 11 : i64} {
  func.func @_linear_kernel(%arg0: i32, %arg1: memref<16x32xf32, #tpu.memory_space<vmem>>, %arg2: memref<32x128xf32, #tpu.memory_space<vmem>>, %arg3: memref<1x128xf32, #tpu.memory_space<vmem>>, %arg4: memref<16x128xf32, #tpu.memory_space<vmem>>) attributes {dimension_semantics = [#tpu.dimension_semantics<parallel>], iteration_bounds = array<i64: 1>, scalar_prefetch = 0 : i64, scratch_operands = 0 : i64, tpu.core_type = #tpu.core_type<tc>, window_params = [{transform_indices = @transform_0, window_bounds = array<i64: 16, 32>}, {pipeline_mode = #tpu.pipeline_mode<synchronous>, transform_indices = @transform_1, window_bounds = array<i64: 32, 128>}, {pipeline_mode = #tpu.pipeline_mode<synchronous>, transform_indices = @transform_2, window_bounds = array<i64: 1, 128>}, {transform_indices = @transform_3, window_bounds = array<i64: 16, 128>}]} {
    %c0 = arith.constant 0 : index
    %c0_0 = arith.constant 0 : index
    %0 = vector.load %arg1[%c0, %c0_0] : memref<16x32xf32, #tpu.memory_space<vmem>>, vector<16x32xf32>
    %1 = arith.truncf %0 : vector<16x32xf32> to vector<16x32xbf16>
    %c0_1 = arith.constant 0 : index
    %c0_2 = arith.constant 0 : index
    %2 = vector.load %arg2[%c0_1, %c0_2] : memref<32x128xf32, #tpu.memory_space<vmem>>, vector<32x128xf32>
    %3 = arith.truncf %2 : vector<32x128xf32> to vector<32x128xbf16>
    %cst = arith.constant dense<0.000000e+00> : vector<16x128xf32>
    %4 = tpu.matmul %1, %3, %cst {dimension_numbers = #tpu.dot_dimension_numbers<[1], [0], [0], [1], [0, 0, 1, 1], [], []>} : vector<16x32xbf16>, vector<32x128xbf16>, vector<16x128xf32> -> vector<16x128xf32>
    %c0_3 = arith.constant 0 : index
    %c0_4 = arith.constant 0 : index
    %5 = vector.load %arg3[%c0_3, %c0_4] : memref<1x128xf32, #tpu.memory_space<vmem>>, vector<1x128xf32>
    %6 = vector.broadcast %5 : vector<1x128xf32> to vector<16x128xf32>
    %7 = arith.addf %4, %6 : vector<16x128xf32>
    %c0_5 = arith.constant 0 : index
    %c0_6 = arith.constant 0 : index
    %8 = vector.load %arg4[%c0_5, %c0_6] : memref<16x128xf32, #tpu.memory_space<vmem>>, vector<16x128xf32>
    tpu.vector_store %arg4[%c0_5, %c0_6], %7 {strides = array<i32>} : memref<16x128xf32, #tpu.memory_space<vmem>>, vector<16x128xf32>,
    return
  }
  func.func @transform_0(%arg0: i32) -> (i32, i32) {
    %c0_i32 = arith.constant 0 : i32
    %c0_i32_0 = arith.constant 0 : i32
    return %arg0, %c0_i32 : i32, i32
  }
  func.func @transform_1(%arg0: i32) -> (i32, i32) {
    %c0_i32 = arith.constant 0 : i32
    %c0_i32_0 = arith.constant 0 : i32
    %c0_i32_1 = arith.constant 0 : i32
    return %c0_i32, %c0_i32_0 : i32, i32
  }
  func.func @transform_2(%arg0: i32) -> (i32, i32) {
    %c0_i32 = arith.constant 0 : i32
    %c0_i32_0 = arith.constant 0 : i32
    %c0_i32_1 = arith.constant 0 : i32
    return %c0_i32, %c0_i32_0 : i32, i32
  }
  func.func @transform_3(%arg0: i32) -> (i32, i32) {
    %c0_i32 = arith.constant 0 : i32
    %c0_i32_0 = arith.constant 0 : i32
    return %arg0, %c0_i32 : i32, i32
  }
}

module attributes {stable_mosaic.version = 11 : i64} {
  func.func @_attn_ln_kernel(%arg0: i32, %arg1: memref<1x8x128xf32, #tpu.memory_space<vmem>>, %arg2: memref<8x8xf32, #tpu.memory_space<vmem>>, %arg3: memref<32x32xf32, #tpu.memory_space<vmem>>, %arg4: memref<1x32xf32, #tpu.memory_space<vmem>>, %arg5: memref<1x8x32xf32, #tpu.memory_space<vmem>>, %arg6: memref<1x32xf32, #tpu.memory_space<vmem>>, %arg7: memref<1x32xf32, #tpu.memory_space<vmem>>, %arg8: memref<1x8x32xf32, #tpu.memory_space<vmem>>) attributes {dimension_semantics = [#tpu.dimension_semantics<parallel>], iteration_bounds = array<i64: 2>, scalar_prefetch = 0 : i64, scratch_operands = 0 : i64, tpu.core_type = #tpu.core_type<tc>, window_params = [{transform_indices = @transform_0, window_bounds = array<i64: 1, 8, 128>}, {pipeline_mode = #tpu.pipeline_mode<synchronous>, transform_indices = @transform_1, window_bounds = array<i64: 8, 8>}, {pipeline_mode = #tpu.pipeline_mode<synchronous>, transform_indices = @transform_2, window_bounds = array<i64: 32, 32>}, {pipeline_mode = #tpu.pipeline_mode<synchronous>, transform_indices = @transform_3, window_bounds = array<i64: 1, 32>}, {transform_indices = @transform_4, window_bounds = array<i64: 1, 8, 32>}, {pipeline_mode = #tpu.pipeline_mode<synchronous>, transform_indices = @transform_5, window_bounds = array<i64: 1, 32>}, {pipeline_mode = #tpu.pipeline_mode<synchronous>, transform_indices = @transform_6, window_bounds = array<i64: 1, 32>}, {transform_indices = @transform_7, window_bounds = array<i64: 1, 8, 32>}]} {
    %c0 = arith.constant 0 : index
    %c0_0 = arith.constant 0 : index
    %c0_1 = arith.constant 0 : index
    %0 = vector.load %arg1[%c0, %c0_0, %c0_1] : memref<1x8x128xf32, #tpu.memory_space<vmem>>, vector<1x8x128xf32>
    %1 = vector.shape_cast %0 : vector<1x8x128xf32> to vector<8x128xf32>
    %c0_2 = arith.constant 0 : index
    %c0_3 = arith.constant 0 : index
    %2 = vector.load %arg2[%c0_2, %c0_3] : memref<8x8xf32, #tpu.memory_space<vmem>>, vector<8x8xf32>
    %c0_4 = arith.constant 0 : index
    %c0_5 = arith.constant 0 : index
    %3 = vector.load %arg3[%c0_4, %c0_5] : memref<32x32xf32, #tpu.memory_space<vmem>>, vector<32x32xf32>
    %c0_6 = arith.constant 0 : index
    %c0_7 = arith.constant 0 : index
    %c0_8 = arith.constant 0 : index
    %4 = vector.load %arg5[%c0_6, %c0_7, %c0_8] : memref<1x8x32xf32, #tpu.memory_space<vmem>>, vector<1x8x32xf32>
    %5 = vector.shape_cast %4 : vector<1x8x32xf32> to vector<8x32xf32>
    %cst = arith.constant 0.000000e+00 : f32
    %6 = vector.broadcast %cst : f32 to vector<8x32xf32>
    %7 = vector.extract_strided_slice %1 {offsets = [0, 0], sizes = [8, 8], strides = [1, 1]} : vector<8x128xf32> to vector<8x8xf32>
    %cst_9 = arith.constant 6.250000e-02 : f32
    %8 = vector.broadcast %cst_9 : f32 to vector<8x8xf32>
    %9 = arith.mulf %7, %8 : vector<8x8xf32>
    %10 = vector.extract_strided_slice %1 {offsets = [0, 32], sizes = [8, 8], strides = [1, 1]} : vector<8x128xf32> to vector<8x8xf32>
    %11 = vector.extract_strided_slice %1 {offsets = [0, 64], sizes = [8, 8], strides = [1, 1]} : vector<8x128xf32> to vector<8x8xf32>
    %12 = vector.extract_strided_slice %1 {offsets = [0, 96], sizes = [8, 8], strides = [1, 1]} : vector<8x128xf32> to vector<8x8xf32>
    %13 = arith.truncf %9 : vector<8x8xf32> to vector<8x8xbf16>
    %14 = arith.truncf %11 : vector<8x8xf32> to vector<8x8xbf16>
    %cst_10 = arith.constant dense<0.000000e+00> : vector<8x8xf32>
    %15 = tpu.matmul %13, %14, %cst_10 {dimension_numbers = #tpu.dot_dimension_numbers<[1], [1], [0], [0], [0, 0, 1, 0], [], []>} : vector<8x8xbf16>, vector<8x8xbf16>, vector<8x8xf32> -> vector<8x8xf32>
    %cst_11 = arith.constant 0.000000e+00 : f32
    %16 = vector.broadcast %cst_11 : f32 to vector<8x8xf32>
    %17 = arith.cmpf oeq, %2, %16 : vector<8x8xf32>
    %cst_12 = arith.constant -1.000000e+20 : f32
    %18 = vector.broadcast %cst_12 : f32 to vector<8x8xf32>
    %19 = arith.select %17, %18, %15 : vector<8x8xi1>, vector<8x8xf32>
    %cst_13 = arith.constant dense<0xFF800000> : vector<8xf32>
    %20 = vector.multi_reduction <maximumf>, %19, %cst_13 [1] : vector<8x8xf32> to vector<8xf32>
    %21 = vector.shape_cast %20 : vector<8xf32> to vector<8x1xf32>
    %22 = vector.broadcast %21 : vector<8x1xf32> to vector<8x8xf32>
    %23 = arith.subf %19, %22 : vector<8x8xf32>
    %24 = math.exp %23 : vector<8x8xf32>
    %cst_14 = arith.constant dense<0.000000e+00> : vector<8xf32>
    %25 = vector.multi_reduction <add>, %24, %cst_14 [1] : vector<8x8xf32> to vector<8xf32>
    %26 = vector.shape_cast %25 : vector<8xf32> to vector<8x1xf32>
    %27 = tpu.reciprocal %26 {approx = true} : vector<8x1xf32> -> vector<8x1xf32>
    %28 = vector.broadcast %27 : vector<8x1xf32> to vector<8x8xf32>
    %29 = arith.mulf %24, %28 : vector<8x8xf32>
    %30 = arith.truncf %29 : vector<8x8xf32> to vector<8x8xbf16>
    %31 = arith.truncf %12 : vector<8x8xf32> to vector<8x8xbf16>
    %cst_15 = arith.constant dense<0.000000e+00> : vector<8x8xf32>
    %32 = tpu.matmul %30, %31, %cst_15 {dimension_numbers = #tpu.dot_dimension_numbers<[1], [0], [0], [1], [0, 0, 1, 1], [], []>} : vector<8x8xbf16>, vector<8x8xbf16>, vector<8x8xf32> -> vector<8x8xf32>
    %33 = arith.mulf %32, %10 : vector<8x8xf32>
    %34 = arith.truncf %33 : vector<8x8xf32> to vector<8x8xbf16>
    %35 = vector.extract_strided_slice %3 {offsets = [0, 0], sizes = [8, 32], strides = [1, 1]} : vector<32x32xf32> to vector<8x32xf32>
    %36 = arith.truncf %35 : vector<8x32xf32> to vector<8x32xbf16>
    %cst_16 = arith.constant dense<0.000000e+00> : vector<8x32xf32>
    %37 = tpu.matmul %34, %36, %cst_16 {dimension_numbers = #tpu.dot_dimension_numbers<[1], [0], [0], [1], [0, 0, 1, 1], [], []>} : vector<8x8xbf16>, vector<8x32xbf16>, vector<8x32xf32> -> vector<8x32xf32>
    %38 = arith.addf %6, %37 : vector<8x32xf32>
    %39 = vector.extract_strided_slice %1 {offsets = [0, 8], sizes = [8, 8], strides = [1, 1]} : vector<8x128xf32> to vector<8x8xf32>
    %cst_17 = arith.constant 6.250000e-02 : f32
    %40 = vector.broadcast %cst_17 : f32 to vector<8x8xf32>
    %41 = arith.mulf %39, %40 : vector<8x8xf32>
    %42 = vector.extract_strided_slice %1 {offsets = [0, 40], sizes = [8, 8], strides = [1, 1]} : vector<8x128xf32> to vector<8x8xf32>
    %43 = vector.extract_strided_slice %1 {offsets = [0, 72], sizes = [8, 8], strides = [1, 1]} : vector<8x128xf32> to vector<8x8xf32>
    %44 = vector.extract_strided_slice %1 {offsets = [0, 104], sizes = [8, 8], strides = [1, 1]} : vector<8x128xf32> to vector<8x8xf32>
    %45 = arith.truncf %41 : vector<8x8xf32> to vector<8x8xbf16>
    %46 = arith.truncf %43 : vector<8x8xf32> to vector<8x8xbf16>
    %cst_18 = arith.constant dense<0.000000e+00> : vector<8x8xf32>
    %47 = tpu.matmul %45, %46, %cst_18 {dimension_numbers = #tpu.dot_dimension_numbers<[1], [1], [0], [0], [0, 0, 1, 0], [], []>} : vector<8x8xbf16>, vector<8x8xbf16>, vector<8x8xf32> -> vector<8x8xf32>
    %cst_19 = arith.constant 0.000000e+00 : f32
    %48 = vector.broadcast %cst_19 : f32 to vector<8x8xf32>
    %49 = arith.cmpf oeq, %2, %48 : vector<8x8xf32>
    %cst_20 = arith.constant -1.000000e+20 : f32
    %50 = vector.broadcast %cst_20 : f32 to vector<8x8xf32>
    %51 = arith.select %49, %50, %47 : vector<8x8xi1>, vector<8x8xf32>
    %cst_21 = arith.constant dense<0xFF800000> : vector<8xf32>
    %52 = vector.multi_reduction <maximumf>, %51, %cst_21 [1] : vector<8x8xf32> to vector<8xf32>
    %53 = vector.shape_cast %52 : vector<8xf32> to vector<8x1xf32>
    %54 = vector.broadcast %53 : vector<8x1xf32> to vector<8x8xf32>
    %55 = arith.subf %51, %54 : vector<8x8xf32>
    %56 = math.exp %55 : vector<8x8xf32>
    %cst_22 = arith.constant dense<0.000000e+00> : vector<8xf32>
    %57 = vector.multi_reduction <add>, %56, %cst_22 [1] : vector<8x8xf32> to vector<8xf32>
    %58 = vector.shape_cast %57 : vector<8xf32> to vector<8x1xf32>
    %59 = tpu.reciprocal %58 {approx = true} : vector<8x1xf32> -> vector<8x1xf32>
    %60 = vector.broadcast %59 : vector<8x1xf32> to vector<8x8xf32>
    %61 = arith.mulf %56, %60 : vector<8x8xf32>
    %62 = arith.truncf %61 : vector<8x8xf32> to vector<8x8xbf16>
    %63 = arith.truncf %44 : vector<8x8xf32> to vector<8x8xbf16>
    %cst_23 = arith.constant dense<0.000000e+00> : vector<8x8xf32>
    %64 = tpu.matmul %62, %63, %cst_23 {dimension_numbers = #tpu.dot_dimension_numbers<[1], [0], [0], [1], [0, 0, 1, 1], [], []>} : vector<8x8xbf16>, vector<8x8xbf16>, vector<8x8xf32> -> vector<8x8xf32>
    %65 = arith.mulf %64, %42 : vector<8x8xf32>
    %66 = arith.truncf %65 : vector<8x8xf32> to vector<8x8xbf16>
    %67 = vector.extract_strided_slice %3 {offsets = [8, 0], sizes = [8, 32], strides = [1, 1]} : vector<32x32xf32> to vector<8x32xf32>
    %68 = arith.truncf %67 : vector<8x32xf32> to vector<8x32xbf16>
    %cst_24 = arith.constant dense<0.000000e+00> : vector<8x32xf32>
    %69 = tpu.matmul %66, %68, %cst_24 {dimension_numbers = #tpu.dot_dimension_numbers<[1], [0], [0], [1], [0, 0, 1, 1], [], []>} : vector<8x8xbf16>, vector<8x32xbf16>, vector<8x32xf32> -> vector<8x32xf32>
    %70 = arith.addf %38, %69 : vector<8x32xf32>
    %71 = vector.extract_strided_slice %1 {offsets = [0, 16], sizes = [8, 8], strides = [1, 1]} : vector<8x128xf32> to vector<8x8xf32>
    %cst_25 = arith.constant 6.250000e-02 : f32
    %72 = vector.broadcast %cst_25 : f32 to vector<8x8xf32>
    %73 = arith.mulf %71, %72 : vector<8x8xf32>
    %74 = vector.extract_strided_slice %1 {offsets = [0, 48], sizes = [8, 8], strides = [1, 1]} : vector<8x128xf32> to vector<8x8xf32>
    %75 = vector.extract_strided_slice %1 {offsets = [0, 80], sizes = [8, 8], strides = [1, 1]} : vector<8x128xf32> to vector<8x8xf32>
    %76 = vector.extract_strided_slice %1 {offsets = [0, 112], sizes = [8, 8], strides = [1, 1]} : vector<8x128xf32> to vector<8x8xf32>
    %77 = arith.truncf %73 : vector<8x8xf32> to vector<8x8xbf16>
    %78 = arith.truncf %75 : vector<8x8xf32> to vector<8x8xbf16>
    %cst_26 = arith.constant dense<0.000000e+00> : vector<8x8xf32>
    %79 = tpu.matmul %77, %78, %cst_26 {dimension_numbers = #tpu.dot_dimension_numbers<[1], [1], [0], [0], [0, 0, 1, 0], [], []>} : vector<8x8xbf16>, vector<8x8xbf16>, vector<8x8xf32> -> vector<8x8xf32>
    %cst_27 = arith.constant 0.000000e+00 : f32
    %80 = vector.broadcast %cst_27 : f32 to vector<8x8xf32>
    %81 = arith.cmpf oeq, %2, %80 : vector<8x8xf32>
    %cst_28 = arith.constant -1.000000e+20 : f32
    %82 = vector.broadcast %cst_28 : f32 to vector<8x8xf32>
    %83 = arith.select %81, %82, %79 : vector<8x8xi1>, vector<8x8xf32>
    %cst_29 = arith.constant dense<0xFF800000> : vector<8xf32>
    %84 = vector.multi_reduction <maximumf>, %83, %cst_29 [1] : vector<8x8xf32> to vector<8xf32>
    %85 = vector.shape_cast %84 : vector<8xf32> to vector<8x1xf32>
    %86 = vector.broadcast %85 : vector<8x1xf32> to vector<8x8xf32>
    %87 = arith.subf %83, %86 : vector<8x8xf32>
    %88 = math.exp %87 : vector<8x8xf32>
    %cst_30 = arith.constant dense<0.000000e+00> : vector<8xf32>
    %89 = vector.multi_reduction <add>, %88, %cst_30 [1] : vector<8x8xf32> to vector<8xf32>
    %90 = vector.shape_cast %89 : vector<8xf32> to vector<8x1xf32>
    %91 = tpu.reciprocal %90 {approx = true} : vector<8x1xf32> -> vector<8x1xf32>
    %92 = vector.broadcast %91 : vector<8x1xf32> to vector<8x8xf32>
    %93 = arith.mulf %88, %92 : vector<8x8xf32>
    %94 = arith.truncf %93 : vector<8x8xf32> to vector<8x8xbf16>
    %95 = arith.truncf %76 : vector<8x8xf32> to vector<8x8xbf16>
    %cst_31 = arith.constant dense<0.000000e+00> : vector<8x8xf32>
    %96 = tpu.matmul %94, %95, %cst_31 {dimension_numbers = #tpu.dot_dimension_numbers<[1], [0], [0], [1], [0, 0, 1, 1], [], []>} : vector<8x8xbf16>, vector<8x8xbf16>, vector<8x8xf32> -> vector<8x8xf32>
    %97 = arith.mulf %96, %74 : vector<8x8xf32>
    %98 = arith.truncf %97 : vector<8x8xf32> to vector<8x8xbf16>
    %99 = vector.extract_strided_slice %3 {offsets = [16, 0], sizes = [8, 32], strides = [1, 1]} : vector<32x32xf32> to vector<8x32xf32>
    %100 = arith.truncf %99 : vector<8x32xf32> to vector<8x32xbf16>
    %cst_32 = arith.constant dense<0.000000e+00> : vector<8x32xf32>
    %101 = tpu.matmul %98, %100, %cst_32 {dimension_numbers = #tpu.dot_dimension_numbers<[1], [0], [0], [1], [0, 0, 1, 1], [], []>} : vector<8x8xbf16>, vector<8x32xbf16>, vector<8x32xf32> -> vector<8x32xf32>
    %102 = arith.addf %70, %101 : vector<8x32xf32>
    %103 = vector.extract_strided_slice %1 {offsets = [0, 24], sizes = [8, 8], strides = [1, 1]} : vector<8x128xf32> to vector<8x8xf32>
    %cst_33 = arith.constant 6.250000e-02 : f32
    %104 = vector.broadcast %cst_33 : f32 to vector<8x8xf32>
    %105 = arith.mulf %103, %104 : vector<8x8xf32>
    %106 = vector.extract_strided_slice %1 {offsets = [0, 56], sizes = [8, 8], strides = [1, 1]} : vector<8x128xf32> to vector<8x8xf32>
    %107 = vector.extract_strided_slice %1 {offsets = [0, 88], sizes = [8, 8], strides = [1, 1]} : vector<8x128xf32> to vector<8x8xf32>
    %108 = vector.extract_strided_slice %1 {offsets = [0, 120], sizes = [8, 8], strides = [1, 1]} : vector<8x128xf32> to vector<8x8xf32>
    %109 = arith.truncf %105 : vector<8x8xf32> to vector<8x8xbf16>
    %110 = arith.truncf %107 : vector<8x8xf32> to vector<8x8xbf16>
    %cst_34 = arith.constant dense<0.000000e+00> : vector<8x8xf32>
    %111 = tpu.matmul %109, %110, %cst_34 {dimension_numbers = #tpu.dot_dimension_numbers<[1], [1], [0], [0], [0, 0, 1, 0], [], []>} : vector<8x8xbf16>, vector<8x8xbf16>, vector<8x8xf32> -> vector<8x8xf32>
    %cst_35 = arith.constant 0.000000e+00 : f32
    %112 = vector.broadcast %cst_35 : f32 to vector<8x8xf32>
    %113 = arith.cmpf oeq, %2, %112 : vector<8x8xf32>
    %cst_36 = arith.constant -1.000000e+20 : f32
    %114 = vector.broadcast %cst_36 : f32 to vector<8x8xf32>
    %115 = arith.select %113, %114, %111 : vector<8x8xi1>, vector<8x8xf32>
    %cst_37 = arith.constant dense<0xFF800000> : vector<8xf32>
    %116 = vector.multi_reduction <maximumf>, %115, %cst_37 [1] : vector<8x8xf32> to vector<8xf32>
    %117 = vector.shape_cast %116 : vector<8xf32> to vector<8x1xf32>
    %118 = vector.broadcast %117 : vector<8x1xf32> to vector<8x8xf32>
    %119 = arith.subf %115, %118 : vector<8x8xf32>
    %120 = math.exp %119 : vector<8x8xf32>
    %cst_38 = arith.constant dense<0.000000e+00> : vector<8xf32>
    %121 = vector.multi_reduction <add>, %120, %cst_38 [1] : vector<8x8xf32> to vector<8xf32>
    %122 = vector.shape_cast %121 : vector<8xf32> to vector<8x1xf32>
    %123 = tpu.reciprocal %122 {approx = true} : vector<8x1xf32> -> vector<8x1xf32>
    %124 = vector.broadcast %123 : vector<8x1xf32> to vector<8x8xf32>
    %125 = arith.mulf %120, %124 : vector<8x8xf32>
    %126 = arith.truncf %125 : vector<8x8xf32> to vector<8x8xbf16>
    %127 = arith.truncf %108 : vector<8x8xf32> to vector<8x8xbf16>
    %cst_39 = arith.constant dense<0.000000e+00> : vector<8x8xf32>
    %128 = tpu.matmul %126, %127, %cst_39 {dimension_numbers = #tpu.dot_dimension_numbers<[1], [0], [0], [1], [0, 0, 1, 1], [], []>} : vector<8x8xbf16>, vector<8x8xbf16>, vector<8x8xf32> -> vector<8x8xf32>
    %129 = arith.mulf %128, %106 : vector<8x8xf32>
    %130 = arith.truncf %129 : vector<8x8xf32> to vector<8x8xbf16>
    %131 = vector.extract_strided_slice %3 {offsets = [24, 0], sizes = [8, 32], strides = [1, 1]} : vector<32x32xf32> to vector<8x32xf32>
    %132 = arith.truncf %131 : vector<8x32xf32> to vector<8x32xbf16>
    %cst_40 = arith.constant dense<0.000000e+00> : vector<8x32xf32>
    %133 = tpu.matmul %130, %132, %cst_40 {dimension_numbers = #tpu.dot_dimension_numbers<[1], [0], [0], [1], [0, 0, 1, 1], [], []>} : vector<8x8xbf16>, vector<8x32xbf16>, vector<8x32xf32> -> vector<8x32xf32>
    %134 = arith.addf %102, %133 : vector<8x32xf32>
    %c0_41 = arith.constant 0 : index
    %c0_42 = arith.constant 0 : index
    %135 = vector.load %arg4[%c0_41, %c0_42] : memref<1x32xf32, #tpu.memory_space<vmem>>, vector<1x32xf32>
    %136 = vector.broadcast %135 : vector<1x32xf32> to vector<8x32xf32>
    %137 = arith.addf %134, %136 : vector<8x32xf32>
    %138 = arith.addf %137, %5 : vector<8x32xf32>
    %cst_43 = arith.constant dense<0.000000e+00> : vector<8xf32>
    %139 = vector.multi_reduction <add>, %138, %cst_43 [1] : vector<8x32xf32> to vector<8xf32>
    %140 = vector.shape_cast %139 : vector<8xf32> to vector<8x1xf32>
    %cst_44 = arith.constant 3.200000e+01 : f32
    %141 = vector.broadcast %cst_44 : f32 to vector<8x1xf32>
    %142 = arith.divf %140, %141 : vector<8x1xf32>
    %143 = vector.broadcast %142 : vector<8x1xf32> to vector<8x32xf32>
    %144 = arith.subf %138, %143 : vector<8x32xf32>
    %145 = arith.mulf %144, %144 : vector<8x32xf32>
    %cst_45 = arith.constant dense<0.000000e+00> : vector<8xf32>
    %146 = vector.multi_reduction <add>, %145, %cst_45 [1] : vector<8x32xf32> to vector<8xf32>
    %147 = vector.shape_cast %146 : vector<8xf32> to vector<8x1xf32>
    %cst_46 = arith.constant 3.200000e+01 : f32
    %148 = vector.broadcast %cst_46 : f32 to vector<8x1xf32>
    %149 = arith.divf %147, %148 : vector<8x1xf32>
    %150 = vector.broadcast %142 : vector<8x1xf32> to vector<8x32xf32>
    %151 = arith.subf %138, %150 : vector<8x32xf32>
    %cst_47 = arith.constant 9.99999974E-6 : f32
    %152 = vector.broadcast %cst_47 : f32 to vector<8x1xf32>
    %153 = arith.addf %149, %152 : vector<8x1xf32>
    %154 = math.rsqrt %153 : vector<8x1xf32>
    %155 = vector.broadcast %154 : vector<8x1xf32> to vector<8x32xf32>
    %156 = arith.mulf %151, %155 : vector<8x32xf32>
    %c0_48 = arith.constant 0 : index
    %c0_49 = arith.constant 0 : index
    %157 = vector.load %arg6[%c0_48, %c0_49] : memref<1x32xf32, #tpu.memory_space<vmem>>, vector<1x32xf32>
    %158 = vector.broadcast %157 : vector<1x32xf32> to vector<8x32xf32>
    %159 = arith.mulf %156, %158 : vector<8x32xf32>
    %c0_50 = arith.constant 0 : index
    %c0_51 = arith.constant 0 : index
    %160 = vector.load %arg7[%c0_50, %c0_51] : memref<1x32xf32, #tpu.memory_space<vmem>>, vector<1x32xf32>
    %161 = vector.broadcast %160 : vector<1x32xf32> to vector<8x32xf32>
    %162 = arith.addf %159, %161 : vector<8x32xf32>
    %c0_52 = arith.constant 0 : index
    %c0_53 = arith.constant 0 : index
    %c0_54 = arith.constant 0 : index
    %163 = vector.load %arg8[%c0_52, %c0_53, %c0_54] : memref<1x8x32xf32, #tpu.memory_space<vmem>>, vector<1x8x32xf32>
    %164 = vector.shape_cast %163 : vector<1x8x32xf32> to vector<8x32xf32>
    %165 = vector.shape_cast %162 : vector<8x32xf32> to vector<1x8x32xf32>
    tpu.vector_store %arg8[%c0_52, %c0_53, %c0_54], %165 {strides = array<i32>} : memref<1x8x32xf32, #tpu.memory_space<vmem>>, vector<1x8x32xf32>,
    return
  }
  func.func @transform_0(%arg0: i32) -> (i32, i32, i32) {
    %c0_i32 = arith.constant 0 : i32
    %c0_i32_0 = arith.constant 0 : i32
    %c0_i32_1 = arith.constant 0 : i32
    return %arg0, %c0_i32, %c0_i32_0 : i32, i32, i32
  }
  func.func @transform_1(%arg0: i32) -> (i32, i32) {
    %c0_i32 = arith.constant 0 : i32
    %c0_i32_0 = arith.constant 0 : i32
    %c0_i32_1 = arith.constant 0 : i32
    return %c0_i32, %c0_i32_0 : i32, i32
  }
  func.func @transform_2(%arg0: i32) -> (i32, i32) {
    %c0_i32 = arith.constant 0 : i32
    %c0_i32_0 = arith.constant 0 : i32
    %c0_i32_1 = arith.constant 0 : i32
    return %c0_i32, %c0_i32_0 : i32, i32
  }
  func.func @transform_3(%arg0: i32) -> (i32, i32) {
    %c0_i32 = arith.constant 0 : i32
    %c0_i32_0 = arith.constant 0 : i32
    %c0_i32_1 = arith.constant 0 : i32
    return %c0_i32, %c0_i32_0 : i32, i32
  }
  func.func @transform_4(%arg0: i32) -> (i32, i32, i32) {
    %c0_i32 = arith.constant 0 : i32
    %c0_i32_0 = arith.constant 0 : i32
    %c0_i32_1 = arith.constant 0 : i32
    return %arg0, %c0_i32, %c0_i32_0 : i32, i32, i32
  }
  func.func @transform_5(%arg0: i32) -> (i32, i32) {
    %c0_i32 = arith.constant 0 : i32
    %c0_i32_0 = arith.constant 0 : i32
    %c0_i32_1 = arith.constant 0 : i32
    return %c0_i32, %c0_i32_0 : i32, i32
  }
  func.func @transform_6(%arg0: i32) -> (i32, i32) {
    %c0_i32 = arith.constant 0 : i32
    %c0_i32_0 = arith.constant 0 : i32
    %c0_i32_1 = arith.constant 0 : i32
    return %c0_i32, %c0_i32_0 : i32, i32
  }
  func.func @transform_7(%arg0: i32) -> (i32, i32, i32) {
    %c0_i32 = arith.constant 0 : i32
    %c0_i32_0 = arith.constant 0 : i32
    %c0_i32_1 = arith.constant 0 : i32
    return %arg0, %c0_i32, %c0_i32_0 : i32, i32, i32
  }
}

module attributes {stable_mosaic.version = 11 : i64} {
  func.func @_ffn_ln_kernel(%arg0: i32, %arg1: memref<16x32xf32, #tpu.memory_space<vmem>>, %arg2: memref<32x128xf32, #tpu.memory_space<vmem>>, %arg3: memref<1x128xf32, #tpu.memory_space<vmem>>, %arg4: memref<128x32xf32, #tpu.memory_space<vmem>>, %arg5: memref<1x32xf32, #tpu.memory_space<vmem>>, %arg6: memref<1x32xf32, #tpu.memory_space<vmem>>, %arg7: memref<1x32xf32, #tpu.memory_space<vmem>>, %arg8: memref<16x32xf32, #tpu.memory_space<vmem>>) attributes {dimension_semantics = [#tpu.dimension_semantics<parallel>], iteration_bounds = array<i64: 1>, scalar_prefetch = 0 : i64, scratch_operands = 0 : i64, tpu.core_type = #tpu.core_type<tc>, window_params = [{transform_indices = @transform_0, window_bounds = array<i64: 16, 32>}, {pipeline_mode = #tpu.pipeline_mode<synchronous>, transform_indices = @transform_1, window_bounds = array<i64: 32, 128>}, {pipeline_mode = #tpu.pipeline_mode<synchronous>, transform_indices = @transform_2, window_bounds = array<i64: 1, 128>}, {pipeline_mode = #tpu.pipeline_mode<synchronous>, transform_indices = @transform_3, window_bounds = array<i64: 128, 32>}, {pipeline_mode = #tpu.pipeline_mode<synchronous>, transform_indices = @transform_4, window_bounds = array<i64: 1, 32>}, {pipeline_mode = #tpu.pipeline_mode<synchronous>, transform_indices = @transform_5, window_bounds = array<i64: 1, 32>}, {pipeline_mode = #tpu.pipeline_mode<synchronous>, transform_indices = @transform_6, window_bounds = array<i64: 1, 32>}, {transform_indices = @transform_7, window_bounds = array<i64: 16, 32>}]} {
    %c0 = arith.constant 0 : index
    %c0_0 = arith.constant 0 : index
    %0 = vector.load %arg1[%c0, %c0_0] : memref<16x32xf32, #tpu.memory_space<vmem>>, vector<16x32xf32>
    %1 = arith.truncf %0 : vector<16x32xf32> to vector<16x32xbf16>
    %c0_1 = arith.constant 0 : index
    %c0_2 = arith.constant 0 : index
    %2 = vector.load %arg2[%c0_1, %c0_2] : memref<32x128xf32, #tpu.memory_space<vmem>>, vector<32x128xf32>
    %3 = arith.truncf %2 : vector<32x128xf32> to vector<32x128xbf16>
    %cst = arith.constant dense<0.000000e+00> : vector<16x128xf32>
    %4 = tpu.matmul %1, %3, %cst {dimension_numbers = #tpu.dot_dimension_numbers<[1], [0], [0], [1], [0, 0, 1, 1], [], []>} : vector<16x32xbf16>, vector<32x128xbf16>, vector<16x128xf32> -> vector<16x128xf32>
    %c0_3 = arith.constant 0 : index
    %c0_4 = arith.constant 0 : index
    %5 = vector.load %arg3[%c0_3, %c0_4] : memref<1x128xf32, #tpu.memory_space<vmem>>, vector<1x128xf32>
    %6 = vector.broadcast %5 : vector<1x128xf32> to vector<16x128xf32>
    %7 = arith.addf %4, %6 : vector<16x128xf32>
    %cst_5 = arith.constant 0.000000e+00 : f32
    %8 = vector.broadcast %cst_5 : f32 to vector<16x128xf32>
    %9 = arith.maximumf %7, %8 : vector<16x128xf32>
    %10 = arith.truncf %9 : vector<16x128xf32> to vector<16x128xbf16>
    %c0_6 = arith.constant 0 : index
    %c0_7 = arith.constant 0 : index
    %11 = vector.load %arg4[%c0_6, %c0_7] : memref<128x32xf32, #tpu.memory_space<vmem>>, vector<128x32xf32>
    %12 = arith.truncf %11 : vector<128x32xf32> to vector<128x32xbf16>
    %cst_8 = arith.constant dense<0.000000e+00> : vector<16x32xf32>
    %13 = tpu.matmul %10, %12, %cst_8 {dimension_numbers = #tpu.dot_dimension_numbers<[1], [0], [0], [1], [0, 0, 1, 1], [], []>} : vector<16x128xbf16>, vector<128x32xbf16>, vector<16x32xf32> -> vector<16x32xf32>
    %c0_9 = arith.constant 0 : index
    %c0_10 = arith.constant 0 : index
    %14 = vector.load %arg5[%c0_9, %c0_10] : memref<1x32xf32, #tpu.memory_space<vmem>>, vector<1x32xf32>
    %15 = vector.broadcast %14 : vector<1x32xf32> to vector<16x32xf32>
    %16 = arith.addf %13, %15 : vector<16x32xf32>
    %17 = arith.addf %16, %0 : vector<16x32xf32>
    %cst_11 = arith.constant dense<0.000000e+00> : vector<16xf32>
    %18 = vector.multi_reduction <add>, %17, %cst_11 [1] : vector<16x32xf32> to vector<16xf32>
    %19 = vector.shape_cast %18 : vector<16xf32> to vector<16x1xf32>
    %cst_12 = arith.constant 3.200000e+01 : f32
    %20 = vector.broadcast %cst_12 : f32 to vector<16x1xf32>
    %21 = arith.divf %19, %20 : vector<16x1xf32>
    %22 = vector.broadcast %21 : vector<16x1xf32> to vector<16x32xf32>
    %23 = arith.subf %17, %22 : vector<16x32xf32>
    %24 = arith.mulf %23, %23 : vector<16x32xf32>
    %cst_13 = arith.constant dense<0.000000e+00> : vector<16xf32>
    %25 = vector.multi_reduction <add>, %24, %cst_13 [1] : vector<16x32xf32> to vector<16xf32>
    %26 = vector.shape_cast %25 : vector<16xf32> to vector<16x1xf32>
    %cst_14 = arith.constant 3.200000e+01 : f32
    %27 = vector.broadcast %cst_14 : f32 to vector<16x1xf32>
    %28 = arith.divf %26, %27 : vector<16x1xf32>
    %29 = vector.broadcast %21 : vector<16x1xf32> to vector<16x32xf32>
    %30 = arith.subf %17, %29 : vector<16x32xf32>
    %cst_15 = arith.constant 9.99999974E-6 : f32
    %31 = vector.broadcast %cst_15 : f32 to vector<16x1xf32>
    %32 = arith.addf %28, %31 : vector<16x1xf32>
    %33 = math.rsqrt %32 : vector<16x1xf32>
    %34 = vector.broadcast %33 : vector<16x1xf32> to vector<16x32xf32>
    %35 = arith.mulf %30, %34 : vector<16x32xf32>
    %c0_16 = arith.constant 0 : index
    %c0_17 = arith.constant 0 : index
    %36 = vector.load %arg6[%c0_16, %c0_17] : memref<1x32xf32, #tpu.memory_space<vmem>>, vector<1x32xf32>
    %37 = vector.broadcast %36 : vector<1x32xf32> to vector<16x32xf32>
    %38 = arith.mulf %35, %37 : vector<16x32xf32>
    %c0_18 = arith.constant 0 : index
    %c0_19 = arith.constant 0 : index
    %39 = vector.load %arg7[%c0_18, %c0_19] : memref<1x32xf32, #tpu.memory_space<vmem>>, vector<1x32xf32>
    %40 = vector.broadcast %39 : vector<1x32xf32> to vector<16x32xf32>
    %41 = arith.addf %38, %40 : vector<16x32xf32>
    %c0_20 = arith.constant 0 : index
    %c0_21 = arith.constant 0 : index
    %42 = vector.load %arg8[%c0_20, %c0_21] : memref<16x32xf32, #tpu.memory_space<vmem>>, vector<16x32xf32>
    tpu.vector_store %arg8[%c0_20, %c0_21], %41 {strides = array<i32>} : memref<16x32xf32, #tpu.memory_space<vmem>>, vector<16x32xf32>,
    return
  }
  func.func @transform_0(%arg0: i32) -> (i32, i32) {
    %c0_i32 = arith.constant 0 : i32
    %c0_i32_0 = arith.constant 0 : i32
    return %arg0, %c0_i32 : i32, i32
  }
  func.func @transform_1(%arg0: i32) -> (i32, i32) {
    %c0_i32 = arith.constant 0 : i32
    %c0_i32_0 = arith.constant 0 : i32
    %c0_i32_1 = arith.constant 0 : i32
    return %c0_i32, %c0_i32_0 : i32, i32
  }
  func.func @transform_2(%arg0: i32) -> (i32, i32) {
    %c0_i32 = arith.constant 0 : i32
    %c0_i32_0 = arith.constant 0 : i32
    %c0_i32_1 = arith.constant 0 : i32
    return %c0_i32, %c0_i32_0 : i32, i32
  }
  func.func @transform_3(%arg0: i32) -> (i32, i32) {
    %c0_i32 = arith.constant 0 : i32
    %c0_i32_0 = arith.constant 0 : i32
    %c0_i32_1 = arith.constant 0 : i32
    return %c0_i32, %c0_i32_0 : i32, i32
  }
  func.func @transform_4(%arg0: i32) -> (i32, i32) {
    %c0_i32 = arith.constant 0 : i32
    %c0_i32_0 = arith.constant 0 : i32
    %c0_i32_1 = arith.constant 0 : i32
    return %c0_i32, %c0_i32_0 : i32, i32
  }
  func.func @transform_5(%arg0: i32) -> (i32, i32) {
    %c0_i32 = arith.constant 0 : i32
    %c0_i32_0 = arith.constant 0 : i32
    %c0_i32_1 = arith.constant 0 : i32
    return %c0_i32, %c0_i32_0 : i32, i32
  }
  func.func @transform_6(%arg0: i32) -> (i32, i32) {
    %c0_i32 = arith.constant 0 : i32
    %c0_i32_0 = arith.constant 0 : i32
    %c0_i32_1 = arith.constant 0 : i32
    return %c0_i32, %c0_i32_0 : i32, i32
  }
  func.func @transform_7(%arg0: i32) -> (i32, i32) {
    %c0_i32 = arith.constant 0 : i32
    %c0_i32_0 = arith.constant 0 : i32
    return %arg0, %c0_i32 : i32, i32
  }
}

</mosaic_0001>

<llo_original>
// kernel: decoder_block.10
$region0: #{decoder_block.10}
  #allocation0 [shape = 'u32[]', space=smem, size = 0x4, offset = 0x4, fixed_abs, tag = 'smem constant byte address 0x4 - core index']
  #allocation1 [shape = 'u32[144,128]{1,0:T(1,128)}', space=vmem, size = 0x12000, scoped, tag = 'internal scratch']
  %s0 = inlined_call_operand.vmem [shape: f32[16,32], index: 0, kind: input, shape index: {}]
  %s1 = inlined_call_operand.vmem [shape: f32[32,32], index: 1, kind: input, shape index: {}]
  %s2 = inlined_call_operand.vmem [shape: f32[1,32], index: 2, kind: input, shape index: {}]
  %s3 = inlined_call_operand.vmem [shape: f32[16,32], index: 3, kind: output, shape index: {}]
  %s4 = sld [smem:[#allocation0]]
  $region22: #{decoder_block.10} parent=0
    _
  %s6 = ssub.s32 1, %s4
  %s7 = scalar_select 0, %s6, %s4
  // Predicated region
  $region2: #{decoder_block.10} parent=0 // pred_check
    _
  $region3: #{decoder_block.10} parent=0 // pred_check_branch
    %9 = sbr.rel (0) target = $region5
  $region4: #{decoder_block.10} parent=0 // pred_region
    _
  $region5: #{decoder_block.10} parent=0 // pred_fallthru
    _
  // Predicated region
  $region6: #{decoder_block.10} parent=0 // pred_check
    _
  $region7: #{decoder_block.10} parent=0 // pred_check_branch
    %11 = sbr.rel (0) target = $region9
  $region8: #{decoder_block.10} parent=0 // pred_region
    _
  $region9: #{decoder_block.10} parent=0 // pred_fallthru
    _
  // Predicated region
  $region10: #{decoder_block.10} parent=0 // pred_check
    _
  $region11: #{decoder_block.10} parent=0 // pred_check_branch
    %13 = sbr.rel (0) target = $region13
  $region12: #{decoder_block.10} parent=0 // pred_region
    _
  $region13: #{decoder_block.10} parent=0 // pred_fallthru
    _
  %v15 = vld [vmem:[%s0] sm:$0xff]
  %v16 = vld [vmem:[%s0 + $0x8] sm:$0xff]
  %v17 = vpack.c.bf16 %v16, %v15
  %v18 = vld [vmem:[%s1] sm:$0xff]
  %v19 = vld [vmem:[%s1 + $0x8] sm:$0xff]
  %v20 = vld [vmem:[%s1 + $0x10] sm:$0xff]
  %v21 = vld [vmem:[%s1 + $0x18] sm:$0xff]
  %v22 = vpack.c.bf16 %v19, %v18
  %v23 = vpack.c.bf16 %v21, %v20
  %v24 = vld [vmem:[%s2] sm:$0x1]
  %v26 = vlaneseq
  %v27 = vshrl.u32 %v26, 7
  %v28 = vsub.s32 0, %v27
  %v29 = vrot.slane %v24, %v28
  %vm31 = vcmask 261120
  %v33 = vsel %vm31, %v17, 0
  %35 = vmatprep.subr.bf16.mxu0 0
  %36 = vmatpush1.bf16.msra.mxu0 0
  %37 = vmatprep.subr.bf16.mxu0 0
  %38 = vmatpush1.bf16.msra.mxu0 0
  %39 = vmatprep.subr.bf16.mxu0 0
  %40 = vmatpush1.bf16.msra.mxu0 0
  %41 = vmatprep.subr.bf16.mxu0 0
  %42 = vmatpush1.bf16.msra.mxu0 0
  %43 = vmatprep.subr.bf16.mxu0 0
  %44 = vmatpush1.bf16.msra.mxu0 0
  %45 = vmatprep.subr.bf16.mxu0 0
  %46 = vmatpush1.bf16.msra.mxu0 0
  %47 = vmatprep.subr.bf16.mxu0 0
  %48 = vmatpush1.bf16.msra.mxu0 %v23
  %49 = vmatprep.subr.bf16.mxu0 0
  %50 = vmatpush1.bf16.msra.mxu0 %v22
  %51 = vmatprep.subr.bf16.mxu0 0
  %52 = vmatpush2.bf16.msra.mxu0 0
  %53 = vmatprep.subr.bf16.mxu0 0
  %54 = vmatpush2.bf16.msra.mxu0 0
  %55 = vmatprep.subr.bf16.mxu0 0
  %56 = vmatpush2.bf16.msra.mxu0 0
  %57 = vmatprep.subr.bf16.mxu0 0
  %58 = vmatpush2.bf16.msra.mxu0 0
  %59 = vmatprep.subr.bf16.mxu0 0
  %60 = vmatpush2.bf16.msra.mxu0 0
  %61 = vmatprep.subr.bf16.mxu0 0
  %62 = vmatpush2.bf16.msra.mxu0 0
  %63 = vmatprep.subr.bf16.mxu0 0
  %64 = vmatpush2.bf16.msra.mxu0 0
  %65 = vmatprep.subr.bf16.mxu0 0
  %66 = vmatpush2.bf16.msra.mxu0 0
  %67 = vmatprep.mubr.bf16.mxu0 0
  %68 = vmatmul.mubr.bf16.gmra.mxu0 %v33
  %v69 = vpop.f32.mrf.mxu0
  %v70 = vadd.f32 %v29, %v69
  %v71 = vpop.f32.mrf.mxu0
  %v72 = vpop.f32.mrf.mxu0
  %v73 = vadd.f32 %v29, %v72
  %v74 = vpop.f32.mrf.mxu0
  %75 = vdwg.mxu0
  %76 = vst.msk [vmem:[%s3] sm:$0xff] %vm31, %v70
  %77 = vst.msk [vmem:[%s3 + $0x8] sm:$0xff] %vm31, %v73
  // Predicated region
  $region14: #{decoder_block.10} parent=0 // pred_check
    _
  $region15: #{decoder_block.10} parent=0 // pred_check_branch
    %79 = sbr.rel (0) target = $region17
  $region16: #{decoder_block.10} parent=0 // pred_region
    _
  $region17: #{decoder_block.10} parent=0 // pred_fallthru
    _
  // Predicated region
  $region18: #{decoder_block.10} parent=0 // pred_check
    _
  $region19: #{decoder_block.10} parent=0 // pred_check_branch
    %81 = sbr.rel (0) target = $region21
  $region20: #{decoder_block.10} parent=0 // pred_region
    _
  $region21: #{decoder_block.10} parent=0 // pred_fallthru
    _

// kernel: decoder_block.9
$region0: #{decoder_block.9}
  #allocation0 [shape = 'u32[]', space=smem, size = 0x4, offset = 0x4, fixed_abs, tag = 'smem constant byte address 0x4 - core index']
  #allocation1 [shape = 'u32[144,128]{1,0:T(1,128)}', space=vmem, size = 0x12000, scoped, tag = 'internal scratch']
  %s0 = inlined_call_operand.vmem [shape: f32[16,32], index: 0, kind: input, shape index: {}]
  %s1 = inlined_call_operand.vmem [shape: f32[32,64], index: 1, kind: input, shape index: {}]
  %s2 = inlined_call_operand.vmem [shape: f32[1,64], index: 2, kind: input, shape index: {}]
  %s3 = inlined_call_operand.vmem [shape: f32[16,64], index: 3, kind: output, shape index: {}]
  %s4 = sld [smem:[#allocation0]]
  $region22: #{decoder_block.9} parent=0
    _
  %s6 = ssub.s32 1, %s4
  %s7 = scalar_select 0, %s6, %s4
  // Predicated region
  $region2: #{decoder_block.9} parent=0 // pred_check
    _
  $region3: #{decoder_block.9} parent=0 // pred_check_branch
    %9 = sbr.rel (0) target = $region5
  $region4: #{decoder_block.9} parent=0 // pred_region
    _
  $region5: #{decoder_block.9} parent=0 // pred_fallthru
    _
  // Predicated region
  $region6: #{decoder_block.9} parent=0 // pred_check
    _
  $region7: #{decoder_block.9} parent=0 // pred_check_branch
    %11 = sbr.rel (0) target = $region9
  $region8: #{decoder_block.9} parent=0 // pred_region
    _
  $region9: #{decoder_block.9} parent=0 // pred_fallthru
    _
  // Predicated region
  $region10: #{decoder_block.9} parent=0 // pred_check
    _
  $region11: #{decoder_block.9} parent=0 // pred_check_branch
    %13 = sbr.rel (0) target = $region13
  $region12: #{decoder_block.9} parent=0 // pred_region
    _
  $region13: #{decoder_block.9} parent=0 // pred_fallthru
    _
  %v15 = vld [vmem:[%s0] sm:$0xff]
  %v16 = vld [vmem:[%s0 + $0x8] sm:$0xff]
  %v17 = vpack.c.bf16 %v16, %v15
  %v18 = vld [vmem:[%s1] sm:$0xff]
  %v19 = vld [vmem:[%s1 + $0x8] sm:$0xff]
  %v20 = vld [vmem:[%s1 + $0x10] sm:$0xff]
  %v21 = vld [vmem:[%s1 + $0x18] sm:$0xff]
  %v22 = vpack.c.bf16 %v19, %v18
  %v23 = vpack.c.bf16 %v21, %v20
  %v24 = vld [vmem:[%s2] sm:$0x1]
  %v26 = vlaneseq
  %v27 = vshrl.u32 %v26, 7
  %v28 = vsub.s32 0, %v27
  %v29 = vrot.slane %v24, %v28
  %vm31 = vcmask 261120
  %v33 = vsel %vm31, %v17, 0
  %35 = vmatprep.subr.bf16.mxu0 0
  %36 = vmatpush1.bf16.msra.mxu0 0
  %37 = vmatprep.subr.bf16.mxu0 0
  %38 = vmatpush1.bf16.msra.mxu0 0
  %39 = vmatprep.subr.bf16.mxu0 0
  %40 = vmatpush1.bf16.msra.mxu0 0
  %41 = vmatprep.subr.bf16.mxu0 0
  %42 = vmatpush1.bf16.msra.mxu0 0
  %43 = vmatprep.subr.bf16.mxu0 0
  %44 = vmatpush1.bf16.msra.mxu0 0
  %45 = vmatprep.subr.bf16.mxu0 0
  %46 = vmatpush1.bf16.msra.mxu0 0
  %47 = vmatprep.subr.bf16.mxu0 0
  %48 = vmatpush1.bf16.msra.mxu0 %v23
  %49 = vmatprep.subr.bf16.mxu0 0
  %50 = vmatpush1.bf16.msra.mxu0 %v22
  %51 = vmatprep.subr.bf16.mxu0 0
  %52 = vmatpush2.bf16.msra.mxu0 0
  %53 = vmatprep.subr.bf16.mxu0 0
  %54 = vmatpush2.bf16.msra.mxu0 0
  %55 = vmatprep.subr.bf16.mxu0 0
  %56 = vmatpush2.bf16.msra.mxu0 0
  %57 = vmatprep.subr.bf16.mxu0 0
  %58 = vmatpush2.bf16.msra.mxu0 0
  %59 = vmatprep.subr.bf16.mxu0 0
  %60 = vmatpush2.bf16.msra.mxu0 0
  %61 = vmatprep.subr.bf16.mxu0 0
  %62 = vmatpush2.bf16.msra.mxu0 0
  %63 = vmatprep.subr.bf16.mxu0 0
  %64 = vmatpush2.bf16.msra.mxu0 0
  %65 = vmatprep.subr.bf16.mxu0 0
  %66 = vmatpush2.bf16.msra.mxu0 0
  %67 = vmatprep.mubr.bf16.mxu0 0
  %68 = vmatmul.mubr.bf16.gmra.mxu0 %v33
  %v69 = vpop.f32.mrf.mxu0
  %v70 = vadd.f32 %v29, %v69
  %v71 = vpop.f32.mrf.mxu0
  %v72 = vpop.f32.mrf.mxu0
  %v73 = vadd.f32 %v29, %v72
  %v74 = vpop.f32.mrf.mxu0
  %75 = vdwg.mxu0
  %vm76 = vcmask 523264
  %77 = vst.msk [vmem:[%s3] sm:$0xff] %vm76, %v70
  %78 = vst.msk [vmem:[%s3 + $0x8] sm:$0xff] %vm76, %v73
  // Predicated region
  $region14: #{decoder_block.9} parent=0 // pred_check
    _
  $region15: #{decoder_block.9} parent=0 // pred_check_branch
    %80 = sbr.rel (0) target = $region17
  $region16: #{decoder_block.9} parent=0 // pred_region
    _
  $region17: #{decoder_block.9} parent=0 // pred_fallthru
    _
  // Predicated region
  $region18: #{decoder_block.9} parent=0 // pred_check
    _
  $region19: #{decoder_block.9} parent=0 // pred_check_branch
    %82 = sbr.rel (0) target = $region21
  $region20: #{decoder_block.9} parent=0 // pred_region
    _
  $region21: #{decoder_block.9} parent=0 // pred_fallthru
    _

// kernel: decoder_block.7
$region0: #{decoder_block.7}
  #allocation0 [shape = 'u32[]', space=smem, size = 0x4, offset = 0x4, fixed_abs, tag = 'smem constant byte address 0x4 - core index']
  #allocation1 [shape = 'u32[144,128]{1,0:T(1,128)}', space=vmem, size = 0x12000, scoped, tag = 'internal scratch']
  %s0 = inlined_call_operand.vmem [shape: f32[16,32], index: 0, kind: input, shape index: {}]
  %s1 = inlined_call_operand.hbm [shape: f32[32,128], index: 1, kind: input, shape index: {}]
  %s2 = inlined_call_operand.vmem [shape: f32[1,128], index: 2, kind: input, shape index: {}]
  %s3 = inlined_call_operand.vmem [shape: f32[16,128], index: 3, kind: output, shape index: {}]
  %s4 = sld [smem:[#allocation0]]
  $region26: #{decoder_block.7} parent=0
    _
  %s6 = ssub.s32 1, %s4
  %s7 = scalar_select 0, %s6, %s4
  $region1: #{decoder_block.7} parent=0
    #allocation2 [shape = 'u8[16384]{0}', space=vmem, size = 0x4000, scoped, tag = 'input window, operand 1, single buffered']
    #allocation3 [shape = 's32[1]{0}', space=sflag, size = 0x4, scoped, tag = 'scoped memory for decoder_block.7']
    %8 = vsyncpa [#allocation3], 0
    // Predicated region
    $region2: #{decoder_block.7} parent=1 // pred_check
      _
    $region3: #{decoder_block.7} parent=1 // pred_check_branch
      %10 = sbr.rel (0) target = $region5
    $region4: #{decoder_block.7} parent=1 // pred_region
      _
    $region5: #{decoder_block.7} parent=1 // pred_fallthru
      _
    // Predicated region
    $region6: #{decoder_block.7} parent=1 // pred_check
      _
    $region7: #{decoder_block.7} parent=1 // pred_check_branch
      %12 = sbr.rel (0) target = $region9
    $region8: #{decoder_block.7} parent=1 // pred_region
      %s14 = ssub.s32 512, 512
      %15 = vsyncadd [#allocation3], %s14
      %s16 = sshll.u32 [#allocation2], 4
      %s17 = int_to_ptr.vmem [resolvable:$true] %s16
      %22 = dma.hbm_to_vmem [thread:$0]  %s1, 512, %s17, [#allocation3], 128, 128, 8
    $region9: #{decoder_block.7} parent=1 // pred_fallthru
      _
    // Predicated region
    $region10: #{decoder_block.7} parent=1 // pred_check
      _
    $region11: #{decoder_block.7} parent=1 // pred_check_branch
      %24 = sbr.rel (0) target = $region13
    $region12: #{decoder_block.7} parent=1 // pred_region
      _
    $region13: #{decoder_block.7} parent=1 // pred_fallthru
      _
    // Predicated region
    $region14: #{decoder_block.7} parent=1 // pred_check
      _
    $region15: #{decoder_block.7} parent=1 // pred_check_branch
      %26 = sbr.rel (0) target = $region17
    $region16: #{decoder_block.7} parent=1 // pred_region
      %27 = dma.done [#allocation3], 512
    $region17: #{decoder_block.7} parent=1 // pred_fallthru
      _
    %v29 = vld [vmem:[%s0] sm:$0xff]
    %v30 = vld [vmem:[%s0 + $0x8] sm:$0xff]
    %v31 = vpack.c.bf16 %v30, %v29
    %v32 = vld [vmem:[#allocation2] sm:$0xff]
    %v33 = vld [vmem:[#allocation2 + $0x8] sm:$0xff]
    %v34 = vld [vmem:[#allocation2 + $0x10] sm:$0xff]
    %v35 = vld [vmem:[#allocation2 + $0x18] sm:$0xff]
    %v36 = vpack.c.bf16 %v33, %v32
    %v37 = vpack.c.bf16 %v35, %v34
    %v38 = vld [vmem:[%s2] sm:$0x1]
    %v40 = vlaneseq
    %v41 = vshrl.u32 %v40, 7
    %v42 = vsub.s32 0, %v41
    %v43 = vrot.slane %v38, %v42
    %vm45 = vcmask 261120
    %v47 = vsel %vm45, %v31, 0
    %49 = vmatprep.subr.bf16.mxu0 0
    %50 = vmatpush1.bf16.msra.mxu0 0
    %51 = vmatprep.subr.bf16.mxu0 0
    %52 = vmatpush1.bf16.msra.mxu0 0
    %53 = vmatprep.subr.bf16.mxu0 0
    %54 = vmatpush1.bf16.msra.mxu0 0
    %55 = vmatprep.subr.bf16.mxu0 0
    %56 = vmatpush1.bf16.msra.mxu0 0
    %57 = vmatprep.subr.bf16.mxu0 0
    %58 = vmatpush1.bf16.msra.mxu0 0
    %59 = vmatprep.subr.bf16.mxu0 0
    %60 = vmatpush1.bf16.msra.mxu0 0
    %61 = vmatprep.subr.bf16.mxu0 0
    %62 = vmatpush1.bf16.msra.mxu0 %v37
    %63 = vmatprep.subr.bf16.mxu0 0
    %64 = vmatpush1.bf16.msra.mxu0 %v36
    %65 = vmatprep.subr.bf16.mxu0 0
    %66 = vmatpush2.bf16.msra.mxu0 0
    %67 = vmatprep.subr.bf16.mxu0 0
    %68 = vmatpush2.bf16.msra.mxu0 0
    %69 = vmatprep.subr.bf16.mxu0 0
    %70 = vmatpush2.bf16.msra.mxu0 0
    %71 = vmatprep.subr.bf16.mxu0 0
    %72 = vmatpush2.bf16.msra.mxu0 0
    %73 = vmatprep.subr.bf16.mxu0 0
    %74 = vmatpush2.bf16.msra.mxu0 0
    %75 = vmatprep.subr.bf16.mxu0 0
    %76 = vmatpush2.bf16.msra.mxu0 0
    %77 = vmatprep.subr.bf16.mxu0 0
    %78 = vmatpush2.bf16.msra.mxu0 0
    %79 = vmatprep.subr.bf16.mxu0 0
    %80 = vmatpush2.bf16.msra.mxu0 0
    %81 = vmatprep.mubr.bf16.mxu0 0
    %82 = vmatmul.mubr.bf16.gmra.mxu0 %v47
    %v83 = vpop.f32.mrf.mxu0
    %v84 = vadd.f32 %v43, %v83
    %v85 = vpop.f32.mrf.mxu0
    %v86 = vpop.f32.mrf.mxu0
    %v87 = vadd.f32 %v43, %v86
    %v88 = vpop.f32.mrf.mxu0
    %89 = vdwg.mxu0
    %90 = vst [vmem:[%s3] sm:$0xff] %v84
    %91 = vst [vmem:[%s3 + $0x8] sm:$0xff] %v87
    // Predicated region
    $region18: #{decoder_block.7} parent=1 // pred_check
      _
    $region19: #{decoder_block.7} parent=1 // pred_check_branch
      %93 = sbr.rel (0) target = $region21
    $region20: #{decoder_block.7} parent=1 // pred_region
      _
    $region21: #{decoder_block.7} parent=1 // pred_fallthru
      _
    // Predicated region
    $region22: #{decoder_block.7} parent=1 // pred_check
      _
    $region23: #{decoder_block.7} parent=1 // pred_check_branch
      %95 = sbr.rel (0) target = $region25
    $region24: #{decoder_block.7} parent=1 // pred_region
      _
    $region25: #{decoder_block.7} parent=1 // pred_fallthru
      _
    %96 = vsyncpa [#allocation3], 1

// kernel: decoder_block.8
$region0: #{decoder_block.8}
  #allocation0 [shape = 'u32[]', space=smem, size = 0x4, offset = 0x4, fixed_abs, tag = 'smem constant byte address 0x4 - core index']
  #allocation1 [shape = 'u32[144,128]{1,0:T(1,128)}', space=vmem, size = 0x12000, scoped, tag = 'internal scratch']
  %s0 = inlined_call_operand.vmem [shape: f32[2,8,128], index: 0, kind: input, shape index: {}]
  %s1 = inlined_call_operand.vmem [shape: f32[8,8], index: 1, kind: input, shape index: {}]
  %s2 = inlined_call_operand.vmem [shape: f32[32,32], index: 2, kind: input, shape index: {}]
  %s3 = inlined_call_operand.vmem [shape: f32[1,32], index: 3, kind: input, shape index: {}]
  %s4 = inlined_call_operand.vmem [shape: f32[2,8,32], index: 4, kind: input, shape index: {}]
  %s5 = inlined_call_operand.vmem [shape: f32[1,32], index: 5, kind: input, shape index: {}]
  %s6 = inlined_call_operand.vmem [shape: f32[1,32], index: 6, kind: input, shape index: {}]
  %s7 = inlined_call_operand.vmem [shape: f32[2,8,32], index: 7, kind: output, shape index: {}]
  %s8 = sld [smem:[#allocation0]]
  $region61: #{decoder_block.8} parent=0
    _
  %s10 = ssub.s32 1, %s8
  %s11 = scalar_select 0, %s10, %s8
  loop: start=0, step=1, limit=4
  $region2: #{decoder_block.8} parent=0 // loop_pre_header
    _
  $region3: #{decoder_block.8} parent=0 // loop_header
    %s13 = sphi 0, %s17
    %p14 = scmp.ge.s32.totalorder %s13, 4
    %s23 = sphi 0, %s25
    %s26 = sphi 0, %s23
    %s27 = sphi 0, %s26
    %s43 = sphi 0, %s27
    %s47 = sphi 0, %s47
    %s49 = sphi 0, %s47
    %s50 = sphi 0, %s49
    %s64 = sphi 0, %s50
    %s68 = sphi 0, %s68
    %s70 = sphi 0, %s68
    %s71 = sphi 0, %s70
    %s85 = sphi 0, %s71
    %s89 = sphi 0, %s89
    %s91 = sphi 0, %s89
    %s92 = sphi 0, %s91
    %s106 = sphi 0, %s92
    %s112 = sphi 0, %s114
    %s115 = sphi 0, %s112
    %s116 = sphi 0, %s115
    %s132 = sphi 0, %s116
    %s136 = sphi 0, %s136
    %s138 = sphi 0, %s136
    %s139 = sphi 0, %s138
    %s153 = sphi 0, %s139
    %s157 = sphi 0, %s157
    %s159 = sphi 0, %s157
    %s160 = sphi 0, %s159
    %s174 = sphi 0, %s160
    %s180 = sphi 0, %s182
    %s183 = sphi 0, %s180
    %s184 = sphi 0, %s183
    %s200 = sphi 0, %s184
  $region4: #{decoder_block.8} parent=0 // loop_header_branch
    %16 = sbr.rel (%p14) target = $region8
  $region5: #{decoder_block.8} parent=0 // loop_body
    %s18 = ssub.s32 %s13, 1
    %s19 = ssub.s32 %s13, 2
    %s20 = sadd.s32 %s13, 1
    %s21 = ssub.s32 %s13, %s20
    %p22 = scmp.eq.s32.totalorder %s21, 0
    %s24 = sadd.s32 %s23, 1
    %s25 = scalar_select %p22, %s23, %s24
    %p28 = pneg %p22
    %p29 = scmp.eq.s32.totalorder %s13, 1
    %p30 = por %p28, %p29
    %p31 = scmp.ne.s32.totalorder %s23, %s26
    %p32 = scmp.eq.s32.totalorder %s13, 0
    %p33 = por %p31, %p32
    %p34 = scmp.ne.s32.totalorder %s23, %s26
    %p35 = scmp.eq.s32.totalorder %s18, 1
    %p36 = por %p34, %p35
    %p37 = scmp.ne.s32.totalorder %s26, %s27
    %p38 = scmp.eq.s32.totalorder %s18, 0
    %p39 = por %p37, %p38
    %p40 = scmp.ne.s32.totalorder %s26, %s27
    %p41 = scmp.eq.s32.totalorder %s19, 1
    %p42 = por %p40, %p41
    %p44 = scmp.ne.s32.totalorder %s27, %s43
    %p45 = scmp.eq.s32.totalorder %s19, 0
    %p46 = por %p44, %p45
    %s48 = sadd.s32 %s47, 1
    %p51 = scmp.eq.s32.totalorder %s13, 1
    %p52 = scmp.ne.s32.totalorder %s47, %s49
    %p53 = scmp.eq.s32.totalorder %s13, 0
    %p54 = por %p52, %p53
    %p55 = scmp.ne.s32.totalorder %s47, %s49
    %p56 = scmp.eq.s32.totalorder %s18, 1
    %p57 = por %p55, %p56
    %p58 = scmp.ne.s32.totalorder %s49, %s50
    %p59 = scmp.eq.s32.totalorder %s18, 0
    %p60 = por %p58, %p59
    %p61 = scmp.ne.s32.totalorder %s49, %s50
    %p62 = scmp.eq.s32.totalorder %s19, 1
    %p63 = por %p61, %p62
    %p65 = scmp.ne.s32.totalorder %s50, %s64
    %p66 = scmp.eq.s32.totalorder %s19, 0
    %p67 = por %p65, %p66
    %s69 = sadd.s32 %s68, 1
    %p72 = scmp.eq.s32.totalorder %s13, 1
    %p73 = scmp.ne.s32.totalorder %s68, %s70
    %p74 = scmp.eq.s32.totalorder %s13, 0
    %p75 = por %p73, %p74
    %p76 = scmp.ne.s32.totalorder %s68, %s70
    %p77 = scmp.eq.s32.totalorder %s18, 1
    %p78 = por %p76, %p77
    %p79 = scmp.ne.s32.totalorder %s70, %s71
    %p80 = scmp.eq.s32.totalorder %s18, 0
    %p81 = por %p79, %p80
    %p82 = scmp.ne.s32.totalorder %s70, %s71
    %p83 = scmp.eq.s32.totalorder %s19, 1
    %p84 = por %p82, %p83
    %p86 = scmp.ne.s32.totalorder %s71, %s85
    %p87 = scmp.eq.s32.totalorder %s19, 0
    %p88 = por %p86, %p87
    %s90 = sadd.s32 %s89, 1
    %p93 = scmp.eq.s32.totalorder %s13, 1
    %p94 = scmp.ne.s32.totalorder %s89, %s91
    %p95 = scmp.eq.s32.totalorder %s13, 0
    %p96 = por %p94, %p95
    %p97 = scmp.ne.s32.totalorder %s89, %s91
    %p98 = scmp.eq.s32.totalorder %s18, 1
    %p99 = por %p97, %p98
    %p100 = scmp.ne.s32.totalorder %s91, %s92
    %p101 = scmp.eq.s32.totalorder %s18, 0
    %p102 = por %p100, %p101
    %p103 = scmp.ne.s32.totalorder %s91, %s92
    %p104 = scmp.eq.s32.totalorder %s19, 1
    %p105 = por %p103, %p104
    %p107 = scmp.ne.s32.totalorder %s92, %s106
    %p108 = scmp.eq.s32.totalorder %s19, 0
    %p109 = por %p107, %p108
    %s110 = ssub.s32 %s13, %s20
    %p111 = scmp.eq.s32.totalorder %s110, 0
    %s113 = sadd.s32 %s112, 1
    %s114 = scalar_select %p111, %s112, %s113
    %p117 = pneg %p111
    %p118 = scmp.eq.s32.totalorder %s13, 1
    %p119 = por %p117, %p118
    %p120 = scmp.ne.s32.totalorder %s112, %s115
    %p121 = scmp.eq.s32.totalorder %s13, 0
    %p122 = por %p120, %p121
    %p123 = scmp.ne.s32.totalorder %s112, %s115
    %p124 = scmp.eq.s32.totalorder %s18, 1
    %p125 = por %p123, %p124
    %p126 = scmp.ne.s32.totalorder %s115, %s116
    %p127 = scmp.eq.s32.totalorder %s18, 0
    %p128 = por %p126, %p127
    %p129 = scmp.ne.s32.totalorder %s115, %s116
    %p130 = scmp.eq.s32.totalorder %s19, 1
    %p131 = por %p129, %p130
    %p133 = scmp.ne.s32.totalorder %s116, %s132
    %p134 = scmp.eq.s32.totalorder %s19, 0
    %p135 = por %p133, %p134
    %s137 = sadd.s32 %s136, 1
    %p140 = scmp.eq.s32.totalorder %s13, 1
    %p141 = scmp.ne.s32.totalorder %s136, %s138
    %p142 = scmp.eq.s32.totalorder %s13, 0
    %p143 = por %p141, %p142
    %p144 = scmp.ne.s32.totalorder %s136, %s138
    %p145 = scmp.eq.s32.totalorder %s18, 1
    %p146 = por %p144, %p145
    %p147 = scmp.ne.s32.totalorder %s138, %s139
    %p148 = scmp.eq.s32.totalorder %s18, 0
    %p149 = por %p147, %p148
    %p150 = scmp.ne.s32.totalorder %s138, %s139
    %p151 = scmp.eq.s32.totalorder %s19, 1
    %p152 = por %p150, %p151
    %p154 = scmp.ne.s32.totalorder %s139, %s153
    %p155 = scmp.eq.s32.totalorder %s19, 0
    %p156 = por %p154, %p155
    %s158 = sadd.s32 %s157, 1
    %p161 = scmp.eq.s32.totalorder %s13, 1
    %p162 = scmp.ne.s32.totalorder %s157, %s159
    %p163 = scmp.eq.s32.totalorder %s13, 0
    %p164 = por %p162, %p163
    %p165 = scmp.ne.s32.totalorder %s157, %s159
    %p166 = scmp.eq.s32.totalorder %s18, 1
    %p167 = por %p165, %p166
    %p168 = scmp.ne.s32.totalorder %s159, %s160
    %p169 = scmp.eq.s32.totalorder %s18, 0
    %p170 = por %p168, %p169
    %p171 = scmp.ne.s32.totalorder %s159, %s160
    %p172 = scmp.eq.s32.totalorder %s19, 1
    %p173 = por %p171, %p172
    %p175 = scmp.ne.s32.totalorder %s160, %s174
    %p176 = scmp.eq.s32.totalorder %s19, 0
    %p177 = por %p175, %p176
    %s178 = ssub.s32 %s13, %s20
    %p179 = scmp.eq.s32.totalorder %s178, 0
    %s181 = sadd.s32 %s180, 1
    %s182 = scalar_select %p179, %s180, %s181
    %p185 = pneg %p179
    %p186 = scmp.eq.s32.totalorder %s13, 1
    %p187 = por %p185, %p186
    %p188 = scmp.ne.s32.totalorder %s180, %s183
    %p189 = scmp.eq.s32.totalorder %s13, 0
    %p190 = por %p188, %p189
    %p191 = scmp.ne.s32.totalorder %s180, %s183
    %p192 = scmp.eq.s32.totalorder %s18, 1
    %p193 = por %p191, %p192
    %p194 = scmp.ne.s32.totalorder %s183, %s184
    %p195 = scmp.eq.s32.totalorder %s18, 0
    %p196 = por %p194, %p195
    %p197 = scmp.ne.s32.totalorder %s183, %s184
    %p198 = scmp.eq.s32.totalorder %s19, 1
    %p199 = por %p197, %p198
    %p201 = scmp.ne.s32.totalorder %s184, %s200
    %p202 = scmp.eq.s32.totalorder %s19, 0
    %p203 = por %p201, %p202
    %p204 = scmp.le.s32.totalorder 1, %s13
    %p205 = scmp.lt.s32.totalorder %s13, 3
    %p206 = pnand %p204, %p205
    %p207 = pneg %p206
    // Predicated region
    $region9: #{decoder_block.8} parent=5 // pred_check
      _
    $region10: #{decoder_block.8} parent=5 // pred_check_branch
      %209 = sbr.rel (%p206) target = $region12
    $region11: #{decoder_block.8} parent=5 // pred_region
      %s210 = ssub.s32 %s13, 1
      // Predicated region
      $region13: #{decoder_block.8} parent=11 // pred_check
        %p211 = pneg %p60
      $region14: #{decoder_block.8} parent=11 // pred_check_branch
        %213 = sbr.rel (%p211) target = $region16
      $region15: #{decoder_block.8} parent=11 // pred_region
        _
      $region16: #{decoder_block.8} parent=11 // pred_fallthru
        _
      // Predicated region
      $region17: #{decoder_block.8} parent=11 // pred_check
        %p214 = pneg %p81
      $region18: #{decoder_block.8} parent=11 // pred_check_branch
        %216 = sbr.rel (%p214) target = $region20
      $region19: #{decoder_block.8} parent=11 // pred_region
        _
      $region20: #{decoder_block.8} parent=11 // pred_fallthru
        _
      // Predicated region
      $region21: #{decoder_block.8} parent=11 // pred_check
        %p217 = pneg %p102
      $region22: #{decoder_block.8} parent=11 // pred_check_branch
        %219 = sbr.rel (%p217) target = $region24
      $region23: #{decoder_block.8} parent=11 // pred_region
        _
      $region24: #{decoder_block.8} parent=11 // pred_fallthru
        _
      // Predicated region
      $region25: #{decoder_block.8} parent=11 // pred_check
        %p220 = pneg %p149
      $region26: #{decoder_block.8} parent=11 // pred_check_branch
        %222 = sbr.rel (%p220) target = $region28
      $region27: #{decoder_block.8} parent=11 // pred_region
        _
      $region28: #{decoder_block.8} parent=11 // pred_fallthru
        _
      // Predicated region
      $region29: #{decoder_block.8} parent=11 // pred_check
        %p223 = pneg %p170
      $region30: #{decoder_block.8} parent=11 // pred_check_branch
        %225 = sbr.rel (%p223) target = $region32
      $region31: #{decoder_block.8} parent=11 // pred_region
        _
      $region32: #{decoder_block.8} parent=11 // pred_fallthru
        _
    $region12: #{decoder_block.8} parent=5 // pred_fallthru
      _
    %p226 = scmp.lt.s32.totalorder %s13, 2
    // Predicated region
    $region33: #{decoder_block.8} parent=5 // pred_check
      %p227 = pneg %p226
    $region34: #{decoder_block.8} parent=5 // pred_check_branch
      %229 = sbr.rel (%p227) target = $region36
    $region35: #{decoder_block.8} parent=5 // pred_region
      // Predicated region
      $region37: #{decoder_block.8} parent=35 // pred_check
        %p230 = pneg %p33
      $region38: #{decoder_block.8} parent=35 // pred_check_branch
        %232 = sbr.rel (%p230) target = $region40
      $region39: #{decoder_block.8} parent=35 // pred_region
        %p233 = scmp.lt.s32.totalorder %s13, 1
        %s234 = scalar_select %p233, %s13, 1
        %s235 = smul.addr %s234, 8
        %s236 = scalar_lea.vmem %s0, %s235
      $region40: #{decoder_block.8} parent=35 // pred_fallthru
        _
      // Predicated region
      $region41: #{decoder_block.8} parent=35 // pred_check
        %p237 = pneg %p122
      $region42: #{decoder_block.8} parent=35 // pred_check_branch
        %239 = sbr.rel (%p237) target = $region44
      $region43: #{decoder_block.8} parent=35 // pred_region
        %p240 = scmp.lt.s32.totalorder %s13, 1
        %s241 = scalar_select %p240, %s13, 1
        %s242 = smul.addr %s241, 8
        %s243 = scalar_lea.vmem %s4, %s242
      $region44: #{decoder_block.8} parent=35 // pred_fallthru
        _
    $region36: #{decoder_block.8} parent=5 // pred_fallthru
      _
    %p244 = scmp.le.s32.totalorder 1, %s13
    %p245 = scmp.lt.s32.totalorder %s13, 3
    %p246 = pnand %p244, %p245
    %p247 = pneg %p246
    // Predicated region
    $region45: #{decoder_block.8} parent=5 // pred_check
      _
    $region46: #{decoder_block.8} parent=5 // pred_check_branch
      %249 = sbr.rel (%p246) target = $region48
    $region47: #{decoder_block.8} parent=5 // pred_region
      %s250 = ssub.s32 %s13, 1
      %p251 = scmp.lt.s32.totalorder %s18, 1
      %s252 = scalar_select %p251, %s18, 1
      %s253 = smul.addr %s252, 8
      %s254 = scalar_lea.vmem %s0, %s253
      %p255 = pneg %p39
      %p256 = pneg %p36
      %p257 = pneg %p60
      %p258 = pneg %p57
      %p259 = pneg %p81
      %p260 = pneg %p78
      %p261 = pneg %p102
      %p262 = pneg %p99
      %p263 = scmp.lt.s32.totalorder %s18, 1
      %s264 = scalar_select %p263, %s18, 1
      %s265 = smul.addr %s264, 8
      %s266 = scalar_lea.vmem %s4, %s265
      %p267 = pneg %p128
      %p268 = pneg %p125
      %p269 = pneg %p149
      %p270 = pneg %p146
      %p271 = pneg %p170
      %p272 = pneg %p167
      %p273 = pneg %p196
      %p274 = pneg %p193
      %p275 = scmp.lt.s32.totalorder %s18, 1
      %s276 = scalar_select %p275, %s18, 1
      %s277 = smul.addr %s276, 8
      %s278 = scalar_lea.vmem %s7, %s277
      %p279 = scmp.lt.s32.totalorder %s18, 1
      %s280 = scalar_select %p279, %s18, 1
      %s281 = smul.addr %s280, 8
      %s282 = scalar_lea.vmem %s0, %s281
      %p283 = scmp.lt.s32.totalorder %s18, 1
      %s284 = scalar_select %p283, %s18, 1
      %s285 = smul.addr %s284, 8
      %s286 = scalar_lea.vmem %s4, %s285
      %p287 = scmp.lt.s32.totalorder %s18, 1
      %s288 = scalar_select %p287, %s18, 1
      %s289 = smul.addr %s288, 8
      %s290 = scalar_lea.vmem %s7, %s289
      %v292 = vld [vmem:[%s282] sm:$0xff]
      %v293 = vld [vmem:[%s1] sm:$0xff]
      %v294 = vld [vmem:[%s2] sm:$0xff]
      %v295 = vld [vmem:[%s2 + $0x8] sm:$0xff]
      %v296 = vld [vmem:[%s2 + $0x10] sm:$0xff]
      %v297 = vld [vmem:[%s2 + $0x18] sm:$0xff]
      %v298 = vld [vmem:[%s286] sm:$0xff]
      %v299 = vmul.f32 %v292, 0.0625
      %v300 = vpack.c.bf16 %v299, %v299
      %v301 = vpack.c.bf16 %v292, %v292
      %303 = vrot.lane.b32.xlu0 %v301, 64
      %v304 = vpop.permute.xlu0 %303
      %vm305 = vcmask 64512
      %v307 = vsel %vm305, %v300, 0
      %v310 = vsel %vm305, %v304, 0
      %312 = vmatprep.subr.bf16.mxu0 0
      %313 = vmatpush1.bf16.xpose.msra.mxu0 0
      %314 = vmatprep.subr.bf16.mxu0 0
      %315 = vmatpush1.bf16.xpose.msra.mxu0 0
      %316 = vmatprep.subr.bf16.mxu0 0
      %317 = vmatpush1.bf16.xpose.msra.mxu0 0
      %318 = vmatprep.subr.bf16.mxu0 0
      %319 = vmatpush1.bf16.xpose.msra.mxu0 0
      %320 = vmatprep.subr.bf16.mxu0 0
      %321 = vmatpush1.bf16.xpose.msra.mxu0 0
      %322 = vmatprep.subr.bf16.mxu0 0
      %323 = vmatpush1.bf16.xpose.msra.mxu0 0
      %324 = vmatprep.subr.bf16.mxu0 0
      %325 = vmatpush1.bf16.xpose.msra.mxu0 0
      %326 = vmatprep.subr.bf16.mxu0 0
      %327 = vmatpush1.bf16.xpose.msra.mxu0 %v310
      %328 = vmatprep.subr.bf16.mxu0 0
      %329 = vmatpush2.bf16.xpose.msra.mxu0 0
      %330 = vmatprep.subr.bf16.mxu0 0
      %331 = vmatpush2.bf16.xpose.msra.mxu0 0
      %332 = vmatprep.subr.bf16.mxu0 0
      %333 = vmatpush2.bf16.xpose.msra.mxu0 0
      %334 = vmatprep.subr.bf16.mxu0 0
      %335 = vmatpush2.bf16.xpose.msra.mxu0 0
      %336 = vmatprep.subr.bf16.mxu0 0
      %337 = vmatpush2.bf16.xpose.msra.mxu0 0
      %338 = vmatprep.subr.bf16.mxu0 0
      %339 = vmatpush2.bf16.xpose.msra.mxu0 0
      %340 = vmatprep.subr.bf16.mxu0 0
      %341 = vmatpush2.bf16.xpose.msra.mxu0 0
      %342 = vmatprep.subr.bf16.mxu0 0
      %343 = vmatpush2.bf16.xpose.msra.mxu0 0
      %344 = vmatprep.mubr.bf16.mxu0 0
      %345 = vmatmul.mubr.bf16.gmra.mxu0 %v307
      %v346 = vpop.f32.mrf.mxu0
      %v347 = vadd.f32 0.0, %v346
      %v348 = vpop.f32.mrf.mxu0
      %v349 = vpop.f32.mrf.mxu0
      %v350 = vpop.f32.mrf.mxu0
      %351 = vdwg.mxu0
      %vm352 = vcmp.eq.f32.partialorder %v293, 0.0
      %v353 = vsel %vm352, -1e+20, %v347
      %v354 = vsel %vm305, %v353, -inf
      %355 = vmax.xlane.f32.xlu0 %v354
      %v356 = vpop.xlane.xlu0 %355
      %v357 = vsub.f32 %v353, %v356
      %v358 = vmul.f32 %v357, 1.442695
      %v359 = vpow.pop %v358
      %v360 = vsel %vm305, %v359, 0.0
      %361 = vadd.xlane.f32.xlu0 %v360
      %v362 = vpop.xlane.xlu0 %361
      %v363 = vrcp.pop %v362
      %v364 = vmul.f32 %v359, %v363
      %v365 = vpack.c.bf16 %v364, %v364
      %366 = vrot.lane.b32.xlu0 %v301, 32
      %v367 = vpop.permute.xlu0 %366
      %v369 = vsel %vm305, %v365, 0
      %vm371 = vcmask 1043456
      %v373 = vsel %vm371, %v367, 0
      %375 = vmatprep.subr.bf16.mxu0 0
      %376 = vmatpush1.bf16.msra.mxu0 0
      %377 = vmatprep.subr.bf16.mxu0 0
      %378 = vmatpush1.bf16.msra.mxu0 0
      %379 = vmatprep.subr.bf16.mxu0 0
      %380 = vmatpush1.bf16.msra.mxu0 0
      %381 = vmatprep.subr.bf16.mxu0 0
      %382 = vmatpush1.bf16.msra.mxu0 0
      %383 = vmatprep.subr.bf16.mxu0 0
      %384 = vmatpush1.bf16.msra.mxu0 0
      %385 = vmatprep.subr.bf16.mxu0 0
      %386 = vmatpush1.bf16.msra.mxu0 0
      %387 = vmatprep.subr.bf16.mxu0 0
      %388 = vmatpush1.bf16.msra.mxu0 0
      %389 = vmatprep.subr.bf16.mxu0 0
      %390 = vmatpush1.bf16.msra.mxu0 %v373
      %391 = vmatprep.subr.bf16.mxu0 0
      %392 = vmatpush2.bf16.msra.mxu0 0
      %393 = vmatprep.subr.bf16.mxu0 0
      %394 = vmatpush2.bf16.msra.mxu0 0
      %395 = vmatprep.subr.bf16.mxu0 0
      %396 = vmatpush2.bf16.msra.mxu0 0
      %397 = vmatprep.subr.bf16.mxu0 0
      %398 = vmatpush2.bf16.msra.mxu0 0
      %399 = vmatprep.subr.bf16.mxu0 0
      %400 = vmatpush2.bf16.msra.mxu0 0
      %401 = vmatprep.subr.bf16.mxu0 0
      %402 = vmatpush2.bf16.msra.mxu0 0
      %403 = vmatprep.subr.bf16.mxu0 0
      %404 = vmatpush2.bf16.msra.mxu0 0
      %405 = vmatprep.subr.bf16.mxu0 0
      %406 = vmatpush2.bf16.msra.mxu0 0
      %407 = vmatprep.mubr.bf16.mxu0 0
      %408 = vmatmul.mubr.bf16.gmra.mxu0 %v369
      %v409 = vpop.f32.mrf.mxu0
      %v410 = vadd.f32 0.0, %v409
      %v411 = vpop.f32.mrf.mxu0
      %v412 = vpop.f32.mrf.mxu0
      %v413 = vpop.f32.mrf.mxu0
      %414 = vdwg.mxu0
      %416 = vrot.lane.b32.xlu0 %v292, 96
      %v417 = vpop.permute.xlu0 %416
      %v419 = vmul.f32 %v410, %v417
      %v420 = vpack.c.bf16 %v419, %v419
      %v421 = vpack.c.bf16 %v294, %v294
      %423 = vrot.lane.b32.xlu0 %v300, 120
      %v424 = vpop.permute.xlu0 %423
      %425 = vrot.lane.b32.xlu0 %v301, 56
      %v426 = vpop.permute.xlu0 %425
      %v428 = vsel %vm305, %v424, 0
      %v431 = vsel %vm305, %v426, 0
      %433 = vmatprep.subr.bf16.mxu0 0
      %434 = vmatpush1.bf16.xpose.msra.mxu0 0
      %435 = vmatprep.subr.bf16.mxu0 0
      %436 = vmatpush1.bf16.xpose.msra.mxu0 0
      %437 = vmatprep.subr.bf16.mxu0 0
      %438 = vmatpush1.bf16.xpose.msra.mxu0 0
      %439 = vmatprep.subr.bf16.mxu0 0
      %440 = vmatpush1.bf16.xpose.msra.mxu0 0
      %441 = vmatprep.subr.bf16.mxu0 0
      %442 = vmatpush1.bf16.xpose.msra.mxu0 0
      %443 = vmatprep.subr.bf16.mxu0 0
      %444 = vmatpush1.bf16.xpose.msra.mxu0 0
      %445 = vmatprep.subr.bf16.mxu0 0
      %446 = vmatpush1.bf16.xpose.msra.mxu0 0
      %447 = vmatprep.subr.bf16.mxu0 0
      %448 = vmatpush1.bf16.xpose.msra.mxu0 %v431
      %449 = vmatprep.subr.bf16.mxu0 0
      %450 = vmatpush2.bf16.xpose.msra.mxu0 0
      %451 = vmatprep.subr.bf16.mxu0 0
      %452 = vmatpush2.bf16.xpose.msra.mxu0 0
      %453 = vmatprep.subr.bf16.mxu0 0
      %454 = vmatpush2.bf16.xpose.msra.mxu0 0
      %455 = vmatprep.subr.bf16.mxu0 0
      %456 = vmatpush2.bf16.xpose.msra.mxu0 0
      %457 = vmatprep.subr.bf16.mxu0 0
      %458 = vmatpush2.bf16.xpose.msra.mxu0 0
      %459 = vmatprep.subr.bf16.mxu0 0
      %460 = vmatpush2.bf16.xpose.msra.mxu0 0
      %461 = vmatprep.subr.bf16.mxu0 0
      %462 = vmatpush2.bf16.xpose.msra.mxu0 0
      %463 = vmatprep.subr.bf16.mxu0 0
      %464 = vmatpush2.bf16.xpose.msra.mxu0 0
      %465 = vmatprep.mubr.bf16.mxu0 0
      %466 = vmatmul.mubr.bf16.gmra.mxu0 %v428
      %v467 = vpop.f32.mrf.mxu0
      %v468 = vadd.f32 0.0, %v467
      %v469 = vpop.f32.mrf.mxu0
      %v470 = vpop.f32.mrf.mxu0
      %v471 = vpop.f32.mrf.mxu0
      %472 = vdwg.mxu0
      %v473 = vsel %vm352, -1e+20, %v468
      %v474 = vsel %vm305, %v473, -inf
      %475 = vmax.xlane.f32.xlu0 %v474
      %v476 = vpop.xlane.xlu0 %475
      %v477 = vsub.f32 %v473, %v476
      %v478 = vmul.f32 %v477, 1.442695
      %v479 = vpow.pop %v478
      %v480 = vsel %vm305, %v479, 0.0
      %481 = vadd.xlane.f32.xlu0 %v480
      %v482 = vpop.xlane.xlu0 %481
      %v483 = vrcp.pop %v482
      %v484 = vmul.f32 %v479, %v483
      %v485 = vpack.c.bf16 %v484, %v484
      %486 = vrot.lane.b32.xlu0 %v301, 24
      %v487 = vpop.permute.xlu0 %486
      %v489 = vsel %vm305, %v485, 0
      %v492 = vsel %vm371, %v487, 0
      %494 = vmatprep.subr.bf16.mxu0 0
      %495 = vmatpush1.bf16.msra.mxu0 0
      %496 = vmatprep.subr.bf16.mxu0 0
      %497 = vmatpush1.bf16.msra.mxu0 0
      %498 = vmatprep.subr.bf16.mxu0 0
      %499 = vmatpush1.bf16.msra.mxu0 0
      %500 = vmatprep.subr.bf16.mxu0 0
      %501 = vmatpush1.bf16.msra.mxu0 0
      %502 = vmatprep.subr.bf16.mxu0 0
      %503 = vmatpush1.bf16.msra.mxu0 0
      %504 = vmatprep.subr.bf16.mxu0 0
      %505 = vmatpush1.bf16.msra.mxu0 0
      %506 = vmatprep.subr.bf16.mxu0 0
      %507 = vmatpush1.bf16.msra.mxu0 0
      %508 = vmatprep.subr.bf16.mxu0 0
      %509 = vmatpush1.bf16.msra.mxu0 %v492
      %510 = vmatprep.subr.bf16.mxu0 0
      %511 = vmatpush2.bf16.msra.mxu0 0
      %512 = vmatprep.subr.bf16.mxu0 0
      %513 = vmatpush2.bf16.msra.mxu0 0
      %514 = vmatprep.subr.bf16.mxu0 0
      %515 = vmatpush2.bf16.msra.mxu0 0
      %516 = vmatprep.subr.bf16.mxu0 0
      %517 = vmatpush2.bf16.msra.mxu0 0
      %518 = vmatprep.subr.bf16.mxu0 0
      %519 = vmatpush2.bf16.msra.mxu0 0
      %520 = vmatprep.subr.bf16.mxu0 0
      %521 = vmatpush2.bf16.msra.mxu0 0
      %522 = vmatprep.subr.bf16.mxu0 0
      %523 = vmatpush2.bf16.msra.mxu0 0
      %524 = vmatprep.subr.bf16.mxu0 0
      %525 = vmatpush2.bf16.msra.mxu0 0
      %526 = vmatprep.mubr.bf16.mxu0 0
      %527 = vmatmul.mubr.bf16.gmra.mxu0 %v489
      %v528 = vpop.f32.mrf.mxu0
      %v529 = vadd.f32 0.0, %v528
      %v530 = vpop.f32.mrf.mxu0
      %v531 = vpop.f32.mrf.mxu0
      %v532 = vpop.f32.mrf.mxu0
      %533 = vdwg.mxu0
      %534 = vrot.lane.b32.xlu0 %v292, 88
      %v535 = vpop.permute.xlu0 %534
      %v537 = vmul.f32 %v529, %v535
      %v538 = vpack.c.bf16 %v537, %v537
      %v539 = vpack.c.bf16 %v295, %v295
      %v541 = vsel %vm305, %v538, 0
      %v544 = vsel %vm371, %v539, 0
      %546 = vmatprep.subr.bf16.mxu0 0
      %547 = vmatpush1.bf16.msra.mxu0 0
      %548 = vmatprep.subr.bf16.mxu0 0
      %549 = vmatpush1.bf16.msra.mxu0 0
      %550 = vmatprep.subr.bf16.mxu0 0
      %551 = vmatpush1.bf16.msra.mxu0 0
      %552 = vmatprep.subr.bf16.mxu0 0
      %553 = vmatpush1.bf16.msra.mxu0 0
      %554 = vmatprep.subr.bf16.mxu0 0
      %555 = vmatpush1.bf16.msra.mxu0 0
      %556 = vmatprep.subr.bf16.mxu0 0
      %557 = vmatpush1.bf16.msra.mxu0 0
      %558 = vmatprep.subr.bf16.mxu0 0
      %559 = vmatpush1.bf16.msra.mxu0 0
      %560 = vmatprep.subr.bf16.mxu0 0
      %561 = vmatpush1.bf16.msra.mxu0 %v544
      %562 = vmatprep.subr.bf16.mxu0 0
      %563 = vmatpush2.bf16.msra.mxu0 0
      %564 = vmatprep.subr.bf16.mxu0 0
      %565 = vmatpush2.bf16.msra.mxu0 0
      %566 = vmatprep.subr.bf16.mxu0 0
      %567 = vmatpush2.bf16.msra.mxu0 0
      %568 = vmatprep.subr.bf16.mxu0 0
      %569 = vmatpush2.bf16.msra.mxu0 0
      %570 = vmatprep.subr.bf16.mxu0 0
      %571 = vmatpush2.bf16.msra.mxu0 0
      %572 = vmatprep.subr.bf16.mxu0 0
      %573 = vmatpush2.bf16.msra.mxu0 0
      %574 = vmatprep.subr.bf16.mxu0 0
      %575 = vmatpush2.bf16.msra.mxu0 0
      %576 = vmatprep.subr.bf16.mxu0 0
      %577 = vmatpush2.bf16.msra.mxu0 0
      %578 = vmatprep.mubr.bf16.mxu0 0
      %579 = vmatmul.mubr.bf16.gmra.mxu0 %v541
      %v580 = vpop.f32.mrf.mxu0
      %v581 = vadd.f32 0.0, %v580
      %v582 = vpop.f32.mrf.mxu0
      %v583 = vpop.f32.mrf.mxu0
      %v584 = vpop.f32.mrf.mxu0
      %585 = vdwg.mxu0
      %v587 = vsel %vm305, %v420, 0
      %v590 = vsel %vm371, %v421, 0
      %592 = vmatprep.subr.bf16.mxu0 0
      %593 = vmatpush1.bf16.msra.mxu0 0
      %594 = vmatprep.subr.bf16.mxu0 0
      %595 = vmatpush1.bf16.msra.mxu0 0
      %596 = vmatprep.subr.bf16.mxu0 0
      %597 = vmatpush1.bf16.msra.mxu0 0
      %598 = vmatprep.subr.bf16.mxu0 0
      %599 = vmatpush1.bf16.msra.mxu0 0
      %600 = vmatprep.subr.bf16.mxu0 0
      %601 = vmatpush1.bf16.msra.mxu0 0
      %602 = vmatprep.subr.bf16.mxu0 0
      %603 = vmatpush1.bf16.msra.mxu0 0
      %604 = vmatprep.subr.bf16.mxu0 0
      %605 = vmatpush1.bf16.msra.mxu0 0
      %606 = vmatprep.subr.bf16.mxu0 0
      %607 = vmatpush1.bf16.msra.mxu0 %v590
      %608 = vmatprep.subr.bf16.mxu0 0
      %609 = vmatpush2.bf16.msra.mxu0 0
      %610 = vmatprep.subr.bf16.mxu0 0
      %611 = vmatpush2.bf16.msra.mxu0 0
      %612 = vmatprep.subr.bf16.mxu0 0
      %613 = vmatpush2.bf16.msra.mxu0 0
      %614 = vmatprep.subr.bf16.mxu0 0
      %615 = vmatpush2.bf16.msra.mxu0 0
      %616 = vmatprep.subr.bf16.mxu0 0
      %617 = vmatpush2.bf16.msra.mxu0 0
      %618 = vmatprep.subr.bf16.mxu0 0
      %619 = vmatpush2.bf16.msra.mxu0 0
      %620 = vmatprep.subr.bf16.mxu0 0
      %621 = vmatpush2.bf16.msra.mxu0 0
      %622 = vmatprep.subr.bf16.mxu0 0
      %623 = vmatpush2.bf16.msra.mxu0 0
      %624 = vmatprep.mubr.bf16.mxu0 0
      %625 = vmatmul.mubr.bf16.gmra.mxu0 %v587
      %v626 = vpop.f32.mrf.mxu0
      %v627 = vadd.f32 %v581, %v626
      %v628 = vpop.f32.mrf.mxu0
      %v629 = vpop.f32.mrf.mxu0
      %v630 = vpop.f32.mrf.mxu0
      %631 = vdwg.mxu0
      %632 = vrot.lane.b32.xlu0 %v300, 112
      %v633 = vpop.permute.xlu0 %632
      %634 = vrot.lane.b32.xlu0 %v301, 48
      %v635 = vpop.permute.xlu0 %634
      %v637 = vsel %vm305, %v633, 0
      %v640 = vsel %vm305, %v635, 0
      %642 = vmatprep.subr.bf16.mxu0 0
      %643 = vmatpush1.bf16.xpose.msra.mxu0 0
      %644 = vmatprep.subr.bf16.mxu0 0
      %645 = vmatpush1.bf16.xpose.msra.mxu0 0
      %646 = vmatprep.subr.bf16.mxu0 0
      %647 = vmatpush1.bf16.xpose.msra.mxu0 0
      %648 = vmatprep.subr.bf16.mxu0 0
      %649 = vmatpush1.bf16.xpose.msra.mxu0 0
      %650 = vmatprep.subr.bf16.mxu0 0
      %651 = vmatpush1.bf16.xpose.msra.mxu0 0
      %652 = vmatprep.subr.bf16.mxu0 0
      %653 = vmatpush1.bf16.xpose.msra.mxu0 0
      %654 = vmatprep.subr.bf16.mxu0 0
      %655 = vmatpush1.bf16.xpose.msra.mxu0 0
      %656 = vmatprep.subr.bf16.mxu0 0
      %657 = vmatpush1.bf16.xpose.msra.mxu0 %v640
      %658 = vmatprep.subr.bf16.mxu0 0
      %659 = vmatpush2.bf16.xpose.msra.mxu0 0
      %660 = vmatprep.subr.bf16.mxu0 0
      %661 = vmatpush2.bf16.xpose.msra.mxu0 0
      %662 = vmatprep.subr.bf16.mxu0 0
      %663 = vmatpush2.bf16.xpose.msra.mxu0 0
      %664 = vmatprep.subr.bf16.mxu0 0
      %665 = vmatpush2.bf16.xpose.msra.mxu0 0
      %666 = vmatprep.subr.bf16.mxu0 0
      %667 = vmatpush2.bf16.xpose.msra.mxu0 0
      %668 = vmatprep.subr.bf16.mxu0 0
      %669 = vmatpush2.bf16.xpose.msra.mxu0 0
      %670 = vmatprep.subr.bf16.mxu0 0
      %671 = vmatpush2.bf16.xpose.msra.mxu0 0
      %672 = vmatprep.subr.bf16.mxu0 0
      %673 = vmatpush2.bf16.xpose.msra.mxu0 0
      %674 = vmatprep.mubr.bf16.mxu0 0
      %675 = vmatmul.mubr.bf16.gmra.mxu0 %v637
      %v676 = vpop.f32.mrf.mxu0
      %v677 = vadd.f32 0.0, %v676
      %v678 = vpop.f32.mrf.mxu0
      %v679 = vpop.f32.mrf.mxu0
      %v680 = vpop.f32.mrf.mxu0
      %681 = vdwg.mxu0
      %v682 = vsel %vm352, -1e+20, %v677
      %v683 = vsel %vm305, %v682, -inf
      %684 = vmax.xlane.f32.xlu0 %v683
      %v685 = vpop.xlane.xlu0 %684
      %v686 = vsub.f32 %v682, %v685
      %v687 = vmul.f32 %v686, 1.442695
      %v688 = vpow.pop %v687
      %v689 = vsel %vm305, %v688, 0.0
      %690 = vadd.xlane.f32.xlu0 %v689
      %v691 = vpop.xlane.xlu0 %690
      %v692 = vrcp.pop %v691
      %v693 = vmul.f32 %v688, %v692
      %v694 = vpack.c.bf16 %v693, %v693
      %695 = vrot.lane.b32.xlu0 %v301, 16
      %v696 = vpop.permute.xlu0 %695
      %v698 = vsel %vm305, %v694, 0
      %v701 = vsel %vm371, %v696, 0
      %703 = vmatprep.subr.bf16.mxu0 0
      %704 = vmatpush1.bf16.msra.mxu0 0
      %705 = vmatprep.subr.bf16.mxu0 0
      %706 = vmatpush1.bf16.msra.mxu0 0
      %707 = vmatprep.subr.bf16.mxu0 0
      %708 = vmatpush1.bf16.msra.mxu0 0
      %709 = vmatprep.subr.bf16.mxu0 0
      %710 = vmatpush1.bf16.msra.mxu0 0
      %711 = vmatprep.subr.bf16.mxu0 0
      %712 = vmatpush1.bf16.msra.mxu0 0
      %713 = vmatprep.subr.bf16.mxu0 0
      %714 = vmatpush1.bf16.msra.mxu0 0
      %715 = vmatprep.subr.bf16.mxu0 0
      %716 = vmatpush1.bf16.msra.mxu0 0
      %717 = vmatprep.subr.bf16.mxu0 0
      %718 = vmatpush1.bf16.msra.mxu0 %v701
      %719 = vmatprep.subr.bf16.mxu0 0
      %720 = vmatpush2.bf16.msra.mxu0 0
      %721 = vmatprep.subr.bf16.mxu0 0
      %722 = vmatpush2.bf16.msra.mxu0 0
      %723 = vmatprep.subr.bf16.mxu0 0
      %724 = vmatpush2.bf16.msra.mxu0 0
      %725 = vmatprep.subr.bf16.mxu0 0
      %726 = vmatpush2.bf16.msra.mxu0 0
      %727 = vmatprep.subr.bf16.mxu0 0
      %728 = vmatpush2.bf16.msra.mxu0 0
      %729 = vmatprep.subr.bf16.mxu0 0
      %730 = vmatpush2.bf16.msra.mxu0 0
      %731 = vmatprep.subr.bf16.mxu0 0
      %732 = vmatpush2.bf16.msra.mxu0 0
      %733 = vmatprep.subr.bf16.mxu0 0
      %734 = vmatpush2.bf16.msra.mxu0 0
      %735 = vmatprep.mubr.bf16.mxu0 0
      %736 = vmatmul.mubr.bf16.gmra.mxu0 %v698
      %v737 = vpop.f32.mrf.mxu0
      %v738 = vadd.f32 0.0, %v737
      %v739 = vpop.f32.mrf.mxu0
      %v740 = vpop.f32.mrf.mxu0
      %v741 = vpop.f32.mrf.mxu0
      %742 = vdwg.mxu0
      %743 = vrot.lane.b32.xlu0 %v292, 80
      %v744 = vpop.permute.xlu0 %743
      %v746 = vmul.f32 %v738, %v744
      %v747 = vpack.c.bf16 %v746, %v746
      %v748 = vpack.c.bf16 %v296, %v296
      %v750 = vsel %vm305, %v747, 0
      %v753 = vsel %vm371, %v748, 0
      %755 = vmatprep.subr.bf16.mxu0 0
      %756 = vmatpush1.bf16.msra.mxu0 0
      %757 = vmatprep.subr.bf16.mxu0 0
      %758 = vmatpush1.bf16.msra.mxu0 0
      %759 = vmatprep.subr.bf16.mxu0 0
      %760 = vmatpush1.bf16.msra.mxu0 0
      %761 = vmatprep.subr.bf16.mxu0 0
      %762 = vmatpush1.bf16.msra.mxu0 0
      %763 = vmatprep.subr.bf16.mxu0 0
      %764 = vmatpush1.bf16.msra.mxu0 0
      %765 = vmatprep.subr.bf16.mxu0 0
      %766 = vmatpush1.bf16.msra.mxu0 0
      %767 = vmatprep.subr.bf16.mxu0 0
      %768 = vmatpush1.bf16.msra.mxu0 0
      %769 = vmatprep.subr.bf16.mxu0 0
      %770 = vmatpush1.bf16.msra.mxu0 %v753
      %771 = vmatprep.subr.bf16.mxu0 0
      %772 = vmatpush2.bf16.msra.mxu0 0
      %773 = vmatprep.subr.bf16.mxu0 0
      %774 = vmatpush2.bf16.msra.mxu0 0
      %775 = vmatprep.subr.bf16.mxu0 0
      %776 = vmatpush2.bf16.msra.mxu0 0
      %777 = vmatprep.subr.bf16.mxu0 0
      %778 = vmatpush2.bf16.msra.mxu0 0
      %779 = vmatprep.subr.bf16.mxu0 0
      %780 = vmatpush2.bf16.msra.mxu0 0
      %781 = vmatprep.subr.bf16.mxu0 0
      %782 = vmatpush2.bf16.msra.mxu0 0
      %783 = vmatprep.subr.bf16.mxu0 0
      %784 = vmatpush2.bf16.msra.mxu0 0
      %785 = vmatprep.subr.bf16.mxu0 0
      %786 = vmatpush2.bf16.msra.mxu0 0
      %787 = vmatprep.mubr.bf16.mxu0 0
      %788 = vmatmul.mubr.bf16.gmra.mxu0 %v750
      %v789 = vpop.f32.mrf.mxu0
      %v790 = vadd.f32 0.0, %v789
      %v791 = vpop.f32.mrf.mxu0
      %v792 = vpop.f32.mrf.mxu0
      %v793 = vpop.f32.mrf.mxu0
      %794 = vdwg.mxu0
      %v795 = vadd.f32 %v627, %v790
      %796 = vrot.lane.b32.xlu0 %v300, 104
      %v797 = vpop.permute.xlu0 %796
      %798 = vrot.lane.b32.xlu0 %v301, 40
      %v799 = vpop.permute.xlu0 %798
      %v801 = vsel %vm305, %v797, 0
      %v804 = vsel %vm305, %v799, 0
      %806 = vmatprep.subr.bf16.mxu0 0
      %807 = vmatpush1.bf16.xpose.msra.mxu0 0
      %808 = vmatprep.subr.bf16.mxu0 0
      %809 = vmatpush1.bf16.xpose.msra.mxu0 0
      %810 = vmatprep.subr.bf16.mxu0 0
      %811 = vmatpush1.bf16.xpose.msra.mxu0 0
      %812 = vmatprep.subr.bf16.mxu0 0
      %813 = vmatpush1.bf16.xpose.msra.mxu0 0
      %814 = vmatprep.subr.bf16.mxu0 0
      %815 = vmatpush1.bf16.xpose.msra.mxu0 0
      %816 = vmatprep.subr.bf16.mxu0 0
      %817 = vmatpush1.bf16.xpose.msra.mxu0 0
      %818 = vmatprep.subr.bf16.mxu0 0
      %819 = vmatpush1.bf16.xpose.msra.mxu0 0
      %820 = vmatprep.subr.bf16.mxu0 0
      %821 = vmatpush1.bf16.xpose.msra.mxu0 %v804
      %822 = vmatprep.subr.bf16.mxu0 0
      %823 = vmatpush2.bf16.xpose.msra.mxu0 0
      %824 = vmatprep.subr.bf16.mxu0 0
      %825 = vmatpush2.bf16.xpose.msra.mxu0 0
      %826 = vmatprep.subr.bf16.mxu0 0
      %827 = vmatpush2.bf16.xpose.msra.mxu0 0
      %828 = vmatprep.subr.bf16.mxu0 0
      %829 = vmatpush2.bf16.xpose.msra.mxu0 0
      %830 = vmatprep.subr.bf16.mxu0 0
      %831 = vmatpush2.bf16.xpose.msra.mxu0 0
      %832 = vmatprep.subr.bf16.mxu0 0
      %833 = vmatpush2.bf16.xpose.msra.mxu0 0
      %834 = vmatprep.subr.bf16.mxu0 0
      %835 = vmatpush2.bf16.xpose.msra.mxu0 0
      %836 = vmatprep.subr.bf16.mxu0 0
      %837 = vmatpush2.bf16.xpose.msra.mxu0 0
      %838 = vmatprep.mubr.bf16.mxu0 0
      %839 = vmatmul.mubr.bf16.gmra.mxu0 %v801
      %v840 = vpop.f32.mrf.mxu0
      %v841 = vadd.f32 0.0, %v840
      %v842 = vpop.f32.mrf.mxu0
      %v843 = vpop.f32.mrf.mxu0
      %v844 = vpop.f32.mrf.mxu0
      %845 = vdwg.mxu0
      %v846 = vsel %vm352, -1e+20, %v841
      %v847 = vsel %vm305, %v846, -inf
      %848 = vmax.xlane.f32.xlu0 %v847
      %v849 = vpop.xlane.xlu0 %848
      %v850 = vsub.f32 %v846, %v849
      %v851 = vmul.f32 %v850, 1.442695
      %v852 = vpow.pop %v851
      %v853 = vsel %vm305, %v852, 0.0
      %854 = vadd.xlane.f32.xlu0 %v853
      %v855 = vpop.xlane.xlu0 %854
      %v856 = vrcp.pop %v855
      %v857 = vmul.f32 %v852, %v856
      %v858 = vpack.c.bf16 %v857, %v857
      %859 = vrot.lane.b32.xlu0 %v301, 8
      %v860 = vpop.permute.xlu0 %859
      %v862 = vsel %vm305, %v858, 0
      %v865 = vsel %vm371, %v860, 0
      %867 = vmatprep.subr.bf16.mxu0 0
      %868 = vmatpush1.bf16.msra.mxu0 0
      %869 = vmatprep.subr.bf16.mxu0 0
      %870 = vmatpush1.bf16.msra.mxu0 0
      %871 = vmatprep.subr.bf16.mxu0 0
      %872 = vmatpush1.bf16.msra.mxu0 0
      %873 = vmatprep.subr.bf16.mxu0 0
      %874 = vmatpush1.bf16.msra.mxu0 0
      %875 = vmatprep.subr.bf16.mxu0 0
      %876 = vmatpush1.bf16.msra.mxu0 0
      %877 = vmatprep.subr.bf16.mxu0 0
      %878 = vmatpush1.bf16.msra.mxu0 0
      %879 = vmatprep.subr.bf16.mxu0 0
      %880 = vmatpush1.bf16.msra.mxu0 0
      %881 = vmatprep.subr.bf16.mxu0 0
      %882 = vmatpush1.bf16.msra.mxu0 %v865
      %883 = vmatprep.subr.bf16.mxu0 0
      %884 = vmatpush2.bf16.msra.mxu0 0
      %885 = vmatprep.subr.bf16.mxu0 0
      %886 = vmatpush2.bf16.msra.mxu0 0
      %887 = vmatprep.subr.bf16.mxu0 0
      %888 = vmatpush2.bf16.msra.mxu0 0
      %889 = vmatprep.subr.bf16.mxu0 0
      %890 = vmatpush2.bf16.msra.mxu0 0
      %891 = vmatprep.subr.bf16.mxu0 0
      %892 = vmatpush2.bf16.msra.mxu0 0
      %893 = vmatprep.subr.bf16.mxu0 0
      %894 = vmatpush2.bf16.msra.mxu0 0
      %895 = vmatprep.subr.bf16.mxu0 0
      %896 = vmatpush2.bf16.msra.mxu0 0
      %897 = vmatprep.subr.bf16.mxu0 0
      %898 = vmatpush2.bf16.msra.mxu0 0
      %899 = vmatprep.mubr.bf16.mxu0 0
      %900 = vmatmul.mubr.bf16.gmra.mxu0 %v862
      %v901 = vpop.f32.mrf.mxu0
      %v902 = vadd.f32 0.0, %v901
      %v903 = vpop.f32.mrf.mxu0
      %v904 = vpop.f32.mrf.mxu0
      %v905 = vpop.f32.mrf.mxu0
      %906 = vdwg.mxu0
      %907 = vrot.lane.b32.xlu0 %v292, 72
      %v908 = vpop.permute.xlu0 %907
      %v910 = vmul.f32 %v902, %v908
      %v911 = vpack.c.bf16 %v910, %v910
      %v912 = vpack.c.bf16 %v297, %v297
      %v914 = vsel %vm305, %v911, 0
      %v917 = vsel %vm371, %v912, 0
      %919 = vmatprep.subr.bf16.mxu0 0
      %920 = vmatpush1.bf16.msra.mxu0 0
      %921 = vmatprep.subr.bf16.mxu0 0
      %922 = vmatpush1.bf16.msra.mxu0 0
      %923 = vmatprep.subr.bf16.mxu0 0
      %924 = vmatpush1.bf16.msra.mxu0 0
      %925 = vmatprep.subr.bf16.mxu0 0
      %926 = vmatpush1.bf16.msra.mxu0 0
      %927 = vmatprep.subr.bf16.mxu0 0
      %928 = vmatpush1.bf16.msra.mxu0 0
      %929 = vmatprep.subr.bf16.mxu0 0
      %930 = vmatpush1.bf16.msra.mxu0 0
      %931 = vmatprep.subr.bf16.mxu0 0
      %932 = vmatpush1.bf16.msra.mxu0 0
      %933 = vmatprep.subr.bf16.mxu0 0
      %934 = vmatpush1.bf16.msra.mxu0 %v917
      %935 = vmatprep.subr.bf16.mxu0 0
      %936 = vmatpush2.bf16.msra.mxu0 0
      %937 = vmatprep.subr.bf16.mxu0 0
      %938 = vmatpush2.bf16.msra.mxu0 0
      %939 = vmatprep.subr.bf16.mxu0 0
      %940 = vmatpush2.bf16.msra.mxu0 0
      %941 = vmatprep.subr.bf16.mxu0 0
      %942 = vmatpush2.bf16.msra.mxu0 0
      %943 = vmatprep.subr.bf16.mxu0 0
      %944 = vmatpush2.bf16.msra.mxu0 0
      %945 = vmatprep.subr.bf16.mxu0 0
      %946 = vmatpush2.bf16.msra.mxu0 0
      %947 = vmatprep.subr.bf16.mxu0 0
      %948 = vmatpush2.bf16.msra.mxu0 0
      %949 = vmatprep.subr.bf16.mxu0 0
      %950 = vmatpush2.bf16.msra.mxu0 0
      %951 = vmatprep.mubr.bf16.mxu0 0
      %952 = vmatmul.mubr.bf16.gmra.mxu0 %v914
      %v953 = vpop.f32.mrf.mxu0
      %v954 = vadd.f32 0.0, %v953
      %v955 = vpop.f32.mrf.mxu0
      %v956 = vpop.f32.mrf.mxu0
      %v957 = vpop.f32.mrf.mxu0
      %958 = vdwg.mxu0
      %v959 = vadd.f32 %v795, %v954
      %v960 = vld [vmem:[%s3] sm:$0x1]
      %v962 = vlaneseq
      %v963 = vshrl.u32 %v962, 7
      %v964 = vsub.s32 0, %v963
      %v965 = vrot.slane %v960, %v964
      %v967 = vadd.f32 %v959, %v965
      %v968 = vadd.f32 %v967, %v298
      %vm969 = vcmask 261120
      %v970 = vsel %vm969, %v968, 0.0
      %971 = vadd.xlane.f32.xlu0 %v970
      %v972 = vpop.xlane.xlu0 %971
      %v973 = vrcp.pop 32.0
      %v974 = vmul.f32 %v972, %v973
      %v975 = vsub.f32 %v968, %v974
      %v976 = vmul.f32 %v975, %v975
      %v977 = vsel %vm969, %v976, 0.0
      %978 = vadd.xlane.f32.xlu0 %v977
      %v979 = vpop.xlane.xlu0 %978
      %v980 = vmul.f32 %v979, %v973
      %v981 = vadd.f32 %v980, 1e-05
      %v982 = vrsqrt.pop %v981
      %v983 = vmul.f32 %v975, %v982
      %v984 = vld [vmem:[%s5] sm:$0x1]
      %v986 = vlaneseq
      %v987 = vshrl.u32 %v986, 7
      %v988 = vsub.s32 0, %v987
      %v989 = vrot.slane %v984, %v988
      %v991 = vmul.f32 %v983, %v989
      %v992 = vld [vmem:[%s6] sm:$0x1]
      %v994 = vlaneseq
      %v995 = vshrl.u32 %v994, 7
      %v996 = vsub.s32 0, %v995
      %v997 = vrot.slane %v992, %v996
      %v999 = vadd.f32 %v991, %v997
      %1000 = vst.msk [vmem:[%s290] sm:$0xff] %vm969, %v999
      %p1001 = scmp.lt.s32.totalorder %s18, 1
      %s1002 = scalar_select %p1001, %s18, 1
      %s1003 = smul.addr %s1002, 8
      %s1004 = scalar_lea.vmem %s7, %s1003
      // Predicated region
      $region49: #{decoder_block.8} parent=47 // pred_check
        %p1005 = pneg %p193
      $region50: #{decoder_block.8} parent=47 // pred_check_branch
        %1007 = sbr.rel (%p1005) target = $region52
      $region51: #{decoder_block.8} parent=47 // pred_region
        _
      $region52: #{decoder_block.8} parent=47 // pred_fallthru
        _
    $region48: #{decoder_block.8} parent=5 // pred_fallthru
      _
    %p1008 = scmp.le.s32.totalorder 2, %s13
    // Predicated region
    $region53: #{decoder_block.8} parent=5 // pred_check
      %p1009 = pneg %p1008
    $region54: #{decoder_block.8} parent=5 // pred_check_branch
      %1011 = sbr.rel (%p1009) target = $region56
    $region55: #{decoder_block.8} parent=5 // pred_region
      %s1012 = ssub.s32 %s13, 2
      // Predicated region
      $region57: #{decoder_block.8} parent=55 // pred_check
        %p1013 = pneg %p199
      $region58: #{decoder_block.8} parent=55 // pred_check_branch
        %1015 = sbr.rel (%p1013) target = $region60
      $region59: #{decoder_block.8} parent=55 // pred_region
        %p1016 = scmp.lt.s32.totalorder %s19, 1
        %s1017 = scalar_select %p1016, %s19, 1
        %s1018 = smul.addr %s1017, 8
        %s1019 = scalar_lea.vmem %s7, %s1018
      $region60: #{decoder_block.8} parent=55 // pred_fallthru
        _
    $region56: #{decoder_block.8} parent=5 // pred_fallthru
      _
  $region6: #{decoder_block.8} parent=0 // loop_footer
    %s17 = sadd.s32 1, %s13
  $region7: #{decoder_block.8} parent=0 // loop_footer_branch
    %12 = sbr.rel target = $region3
  $region8: #{decoder_block.8} parent=0 // loop_exit
    _

// kernel: decoder_block.13
$region0: #{decoder_block.13}
  #allocation0 [shape = 'u32[]', space=smem, size = 0x4, offset = 0x4, fixed_abs, tag = 'smem constant byte address 0x4 - core index']
  #allocation1 [shape = 'u32[144,128]{1,0:T(1,128)}', space=vmem, size = 0x12000, scoped, tag = 'internal scratch']
  %s0 = inlined_call_operand.vmem [shape: f32[16,32], index: 0, kind: input, shape index: {}]
  %s1 = inlined_call_operand.vmem [shape: f32[32,128], index: 1, kind: input, shape index: {}]
  %s2 = inlined_call_operand.vmem [shape: f32[1,128], index: 2, kind: input, shape index: {}]
  %s3 = inlined_call_operand.vmem [shape: f32[128,32], index: 3, kind: input, shape index: {}]
  %s4 = inlined_call_operand.vmem [shape: f32[1,32], index: 4, kind: input, shape index: {}]
  %s5 = inlined_call_operand.vmem [shape: f32[1,32], index: 5, kind: input, shape index: {}]
  %s6 = inlined_call_operand.vmem [shape: f32[1,32], index: 6, kind: input, shape index: {}]
  %s7 = inlined_call_operand.hbm [shape: f32[16,32], index: 7, kind: output, shape index: {}]
  %s8 = sld [smem:[#allocation0]]
  $region38: #{decoder_block.13} parent=0
    _
  %s10 = ssub.s32 1, %s8
  %s11 = scalar_select 0, %s10, %s8
  $region1: #{decoder_block.13} parent=0
    #allocation2 [shape = 'u8[8192]{0}', space=vmem, size = 0x2000, scoped, tag = 'output window, operand 0, single buffered']
    #allocation3 [shape = 's32[1]{0}', space=sflag, size = 0x4, scoped, tag = 'scoped memory for decoder_block.13']
    %12 = vsyncpa [#allocation3], 0
    // Predicated region
    $region2: #{decoder_block.13} parent=1 // pred_check
      _
    $region3: #{decoder_block.13} parent=1 // pred_check_branch
      %14 = sbr.rel (0) target = $region5
    $region4: #{decoder_block.13} parent=1 // pred_region
      _
    $region5: #{decoder_block.13} parent=1 // pred_fallthru
      _
    // Predicated region
    $region6: #{decoder_block.13} parent=1 // pred_check
      _
    $region7: #{decoder_block.13} parent=1 // pred_check_branch
      %16 = sbr.rel (0) target = $region9
    $region8: #{decoder_block.13} parent=1 // pred_region
      _
    $region9: #{decoder_block.13} parent=1 // pred_fallthru
      _
    // Predicated region
    $region10: #{decoder_block.13} parent=1 // pred_check
      _
    $region11: #{decoder_block.13} parent=1 // pred_check_branch
      %18 = sbr.rel (0) target = $region13
    $region12: #{decoder_block.13} parent=1 // pred_region
      _
    $region13: #{decoder_block.13} parent=1 // pred_fallthru
      _
    // Predicated region
    $region14: #{decoder_block.13} parent=1 // pred_check
      _
    $region15: #{decoder_block.13} parent=1 // pred_check_branch
      %20 = sbr.rel (0) target = $region17
    $region16: #{decoder_block.13} parent=1 // pred_region
      _
    $region17: #{decoder_block.13} parent=1 // pred_fallthru
      _
    // Predicated region
    $region18: #{decoder_block.13} parent=1 // pred_check
      _
    $region19: #{decoder_block.13} parent=1 // pred_check_branch
      %22 = sbr.rel (0) target = $region21
    $region20: #{decoder_block.13} parent=1 // pred_region
      _
    $region21: #{decoder_block.13} parent=1 // pred_fallthru
      _
    // Predicated region
    $region22: #{decoder_block.13} parent=1 // pred_check
      _
    $region23: #{decoder_block.13} parent=1 // pred_check_branch
      %24 = sbr.rel (0) target = $region25
    $region24: #{decoder_block.13} parent=1 // pred_region
      _
    $region25: #{decoder_block.13} parent=1 // pred_fallthru
      _
    // Predicated region
    $region26: #{decoder_block.13} parent=1 // pred_check
      _
    $region27: #{decoder_block.13} parent=1 // pred_check_branch
      %26 = sbr.rel (0) target = $region29
    $region28: #{decoder_block.13} parent=1 // pred_region
      _
    $region29: #{decoder_block.13} parent=1 // pred_fallthru
      _
    %v28 = vld [vmem:[%s0] sm:$0xff]
    %v29 = vld [vmem:[%s0 + $0x8] sm:$0xff]
    %v30 = vpack.c.bf16 %v29, %v28
    %v31 = vld [vmem:[%s1] sm:$0xff]
    %v32 = vld [vmem:[%s1 + $0x8] sm:$0xff]
    %v33 = vld [vmem:[%s1 + $0x10] sm:$0xff]
    %v34 = vld [vmem:[%s1 + $0x18] sm:$0xff]
    %v35 = vpack.c.bf16 %v32, %v31
    %v36 = vpack.c.bf16 %v34, %v33
    %v37 = vld [vmem:[%s2] sm:$0x1]
    %v39 = vlaneseq
    %v40 = vshrl.u32 %v39, 7
    %v41 = vsub.s32 0, %v40
    %v42 = vrot.slane %v37, %v41
    %vm44 = vcmask 261120
    %v46 = vsel %vm44, %v30, 0
    %48 = vmatprep.subr.bf16.mxu0 0
    %49 = vmatpush1.bf16.msra.mxu0 0
    %50 = vmatprep.subr.bf16.mxu0 0
    %51 = vmatpush1.bf16.msra.mxu0 0
    %52 = vmatprep.subr.bf16.mxu0 0
    %53 = vmatpush1.bf16.msra.mxu0 0
    %54 = vmatprep.subr.bf16.mxu0 0
    %55 = vmatpush1.bf16.msra.mxu0 0
    %56 = vmatprep.subr.bf16.mxu0 0
    %57 = vmatpush1.bf16.msra.mxu0 0
    %58 = vmatprep.subr.bf16.mxu0 0
    %59 = vmatpush1.bf16.msra.mxu0 0
    %60 = vmatprep.subr.bf16.mxu0 0
    %61 = vmatpush1.bf16.msra.mxu0 %v36
    %62 = vmatprep.subr.bf16.mxu0 0
    %63 = vmatpush1.bf16.msra.mxu0 %v35
    %64 = vmatprep.subr.bf16.mxu0 0
    %65 = vmatpush2.bf16.msra.mxu0 0
    %66 = vmatprep.subr.bf16.mxu0 0
    %67 = vmatpush2.bf16.msra.mxu0 0
    %68 = vmatprep.subr.bf16.mxu0 0
    %69 = vmatpush2.bf16.msra.mxu0 0
    %70 = vmatprep.subr.bf16.mxu0 0
    %71 = vmatpush2.bf16.msra.mxu0 0
    %72 = vmatprep.subr.bf16.mxu0 0
    %73 = vmatpush2.bf16.msra.mxu0 0
    %74 = vmatprep.subr.bf16.mxu0 0
    %75 = vmatpush2.bf16.msra.mxu0 0
    %76 = vmatprep.subr.bf16.mxu0 0
    %77 = vmatpush2.bf16.msra.mxu0 0
    %78 = vmatprep.subr.bf16.mxu0 0
    %79 = vmatpush2.bf16.msra.mxu0 0
    %80 = vmatprep.mubr.bf16.mxu0 0
    %81 = vmatmul.mubr.bf16.gmra.mxu0 %v46
    %v82 = vpop.f32.mrf.mxu0
    %v83 = vadd.f32 %v42, %v82
    %v84 = vpop.f32.mrf.mxu0
    %v85 = vpop.f32.mrf.mxu0
    %v86 = vadd.f32 %v42, %v85
    %v87 = vpop.f32.mrf.mxu0
    %88 = vdwg.mxu0
    %v89 = vmax.f32 %v83, 0.0
    %v90 = vmax.f32 %v86, 0.0
    %v91 = vpack.c.bf16 %v90, %v89
    %v92 = vld [vmem:[%s3] sm:$0xff]
    %v93 = vld [vmem:[%s3 + $0x8] sm:$0xff]
    %v94 = vld [vmem:[%s3 + $0x10] sm:$0xff]
    %v95 = vld [vmem:[%s3 + $0x18] sm:$0xff]
    %v96 = vld [vmem:[%s3 + $0x20] sm:$0xff]
    %v97 = vld [vmem:[%s3 + $0x28] sm:$0xff]
    %v98 = vld [vmem:[%s3 + $0x30] sm:$0xff]
    %v99 = vld [vmem:[%s3 + $0x38] sm:$0xff]
    %v100 = vld [vmem:[%s3 + $0x40] sm:$0xff]
    %v101 = vld [vmem:[%s3 + $0x48] sm:$0xff]
    %v102 = vld [vmem:[%s3 + $0x50] sm:$0xff]
    %v103 = vld [vmem:[%s3 + $0x58] sm:$0xff]
    %v104 = vld [vmem:[%s3 + $0x60] sm:$0xff]
    %v105 = vld [vmem:[%s3 + $0x68] sm:$0xff]
    %v106 = vld [vmem:[%s3 + $0x70] sm:$0xff]
    %v107 = vld [vmem:[%s3 + $0x78] sm:$0xff]
    %v108 = vpack.c.bf16 %v93, %v92
    %v109 = vpack.c.bf16 %v95, %v94
    %v110 = vpack.c.bf16 %v97, %v96
    %v111 = vpack.c.bf16 %v99, %v98
    %v112 = vpack.c.bf16 %v101, %v100
    %v113 = vpack.c.bf16 %v103, %v102
    %v114 = vpack.c.bf16 %v105, %v104
    %v115 = vpack.c.bf16 %v107, %v106
    %v116 = vld [vmem:[%s4] sm:$0x1]
    %v118 = vlaneseq
    %v119 = vshrl.u32 %v118, 7
    %v120 = vsub.s32 0, %v119
    %v121 = vrot.slane %v116, %v120
    %123 = vmatprep.subr.bf16.mxu0 0
    %124 = vmatpush1.bf16.msra.mxu0 %v115
    %125 = vmatprep.subr.bf16.mxu0 0
    %126 = vmatpush1.bf16.msra.mxu0 %v114
    %127 = vmatprep.subr.bf16.mxu0 0
    %128 = vmatpush1.bf16.msra.mxu0 %v113
    %129 = vmatprep.subr.bf16.mxu0 0
    %130 = vmatpush1.bf16.msra.mxu0 %v112
    %131 = vmatprep.subr.bf16.mxu0 0
    %132 = vmatpush1.bf16.msra.mxu0 %v111
    %133 = vmatprep.subr.bf16.mxu0 0
    %134 = vmatpush1.bf16.msra.mxu0 %v110
    %135 = vmatprep.subr.bf16.mxu0 0
    %136 = vmatpush1.bf16.msra.mxu0 %v109
    %137 = vmatprep.subr.bf16.mxu0 0
    %138 = vmatpush1.bf16.msra.mxu0 %v108
    %139 = vmatprep.subr.bf16.mxu0 0
    %140 = vmatpush2.bf16.msra.mxu0 0
    %141 = vmatprep.subr.bf16.mxu0 0
    %142 = vmatpush2.bf16.msra.mxu0 0
    %143 = vmatprep.subr.bf16.mxu0 0
    %144 = vmatpush2.bf16.msra.mxu0 0
    %145 = vmatprep.subr.bf16.mxu0 0
    %146 = vmatpush2.bf16.msra.mxu0 0
    %147 = vmatprep.subr.bf16.mxu0 0
    %148 = vmatpush2.bf16.msra.mxu0 0
    %149 = vmatprep.subr.bf16.mxu0 0
    %150 = vmatpush2.bf16.msra.mxu0 0
    %151 = vmatprep.subr.bf16.mxu0 0
    %152 = vmatpush2.bf16.msra.mxu0 0
    %153 = vmatprep.subr.bf16.mxu0 0
    %154 = vmatpush2.bf16.msra.mxu0 0
    %155 = vmatprep.mubr.bf16.mxu0 0
    %156 = vmatmul.mubr.bf16.gmra.mxu0 %v91
    %v157 = vpop.f32.mrf.mxu0
    %v158 = vadd.f32 %v121, %v157
    %v159 = vpop.f32.mrf.mxu0
    %v160 = vpop.f32.mrf.mxu0
    %v161 = vadd.f32 %v121, %v160
    %v162 = vpop.f32.mrf.mxu0
    %163 = vdwg.mxu0
    %v164 = vadd.f32 %v158, %v28
    %v165 = vadd.f32 %v161, %v29
    %v166 = vsel %vm44, %v164, 0.0
    %167 = vadd.xlane.f32.xlu0 %v166
    %v168 = vpop.xlane.xlu0 %167
    %v169 = vsel %vm44, %v165, 0.0
    %170 = vadd.xlane.f32.xlu0 %v169
    %v171 = vpop.xlane.xlu0 %170
    %v172 = vrcp.pop 32.0
    %v173 = vmul.f32 %v168, %v172
    %v174 = vmul.f32 %v171, %v172
    %v175 = vsub.f32 %v164, %v173
    %v176 = vsub.f32 %v165, %v174
    %v177 = vmul.f32 %v175, %v175
    %v178 = vmul.f32 %v176, %v176
    %v179 = vsel %vm44, %v177, 0.0
    %180 = vadd.xlane.f32.xlu0 %v179
    %v181 = vpop.xlane.xlu0 %180
    %v182 = vsel %vm44, %v178, 0.0
    %183 = vadd.xlane.f32.xlu0 %v182
    %v184 = vpop.xlane.xlu0 %183
    %v185 = vmul.f32 %v181, %v172
    %v186 = vmul.f32 %v184, %v172
    %v187 = vadd.f32 %v185, 1e-05
    %v188 = vadd.f32 %v186, 1e-05
    %v189 = vrsqrt.pop %v187
    %v190 = vrsqrt.pop %v188
    %v191 = vmul.f32 %v175, %v189
    %v192 = vmul.f32 %v176, %v190
    %v193 = vld [vmem:[%s5] sm:$0x1]
    %v195 = vlaneseq
    %v196 = vshrl.u32 %v195, 7
    %v197 = vsub.s32 0, %v196
    %v198 = vrot.slane %v193, %v197
    %v200 = vmul.f32 %v191, %v198
    %v201 = vmul.f32 %v192, %v198
    %v202 = vld [vmem:[%s6] sm:$0x1]
    %v204 = vlaneseq
    %v205 = vshrl.u32 %v204, 7
    %v206 = vsub.s32 0, %v205
    %v207 = vrot.slane %v202, %v206
    %v209 = vadd.f32 %v200, %v207
    %v210 = vadd.f32 %v201, %v207
    %211 = vst.msk [vmem:[#allocation2] sm:$0xff] %vm44, %v209
    %212 = vst.msk [vmem:[#allocation2 + $0x8] sm:$0xff] %vm44, %v210
    // Predicated region
    $region30: #{decoder_block.13} parent=1 // pred_check
      _
    $region31: #{decoder_block.13} parent=1 // pred_check_branch
      %214 = sbr.rel (0) target = $region33
    $region32: #{decoder_block.13} parent=1 // pred_region
      %s216 = ssub.s32 256, 256
      %217 = vsyncadd [#allocation3], %s216
      %s218 = sshll.u32 [#allocation2], 4
      %s219 = int_to_ptr.vmem [resolvable:$true] %s218
      %224 = dma.vmem_to_hbm [thread:$0]  %s219, 256, %s7, [#allocation3], 128, 128, 8
    $region33: #{decoder_block.13} parent=1 // pred_fallthru
      _
    // Predicated region
    $region34: #{decoder_block.13} parent=1 // pred_check
      _
    $region35: #{decoder_block.13} parent=1 // pred_check_branch
      %226 = sbr.rel (0) target = $region37
    $region36: #{decoder_block.13} parent=1 // pred_region
      %227 = dma.done [#allocation3], 256
    $region37: #{decoder_block.13} parent=1 // pred_fallthru
      _
    %228 = vsyncpa [#allocation3], 1

</llo_original>
